<compile_context>
chip_gen: v6e
topology: v6e:2x2x1
jax: 0.10.0
libtpu: 0.0.40
codegen_flags: <defaults>
</compile_context>

<pallas_src>
import functools

import jax
import jax.numpy as jnp
from jax import lax
from jax.experimental import pallas as pl
from jax.experimental.pallas import tpu as pltpu

# ---------------- model hyper-parameters (small, consistent with module) ----
BSZ      = 2
T        = 8            # audio_feat time steps
D_MODEL  = 32           # transformer_args.d_model == in_dim
N_HEADS  = 4
D_HEAD   = D_MODEL // N_HEADS
D_FF     = 64           # dim_feedforward
OUT_DIM  = 16           # out_dim of linear_proj
LN_EPS   = 1e-5

# ---------------- packed-parameter slab layout --------------------------------
# weight slab (W_ROWS, 128): each region starts at an 8-aligned row, cols 0:width
ROW_WQKV = 0                       # (D_MODEL, 3*D_MODEL)  [Wq | Wk | Wv]
ROW_WO   = ROW_WQKV + D_MODEL      # (D_MODEL, D_MODEL)
ROW_W1   = ROW_WO + D_MODEL        # (D_MODEL, D_FF)
ROW_W2   = ROW_W1 + D_MODEL        # (D_FF,   D_MODEL)
ROW_WP   = ROW_W2 + D_FF           # (D_MODEL, OUT_DIM)
W_ROWS   = ROW_WP + D_MODEL        # = 192
W_COLS   = 128

# vector slab (V_ROWS, 128): one row per bias / LN param / CLS token
(VROW_BQKV, VROW_BO, VROW_G1, VROW_BE1, VROW_B1,
 VROW_B2, VROW_G2, VROW_BE2, VROW_BP, VROW_CLS) = range(10)
V_ROWS = 16
V_COLS = 128


# --------------------------- Pallas kernel ------------------------------------
def proj_net_kernel(lens_ref, audio_ref, w_ref, v_ref, o_ref, *, bsz):
    """One invocation for the whole batch.

    lens_ref : SMEM (bsz,) int32   -- valid audio lengths (without CLS)
    audio_ref: VMEM (bsz*T, D)     -- audio frames, batch-major rows
    w_ref    : VMEM (W_ROWS, 128)  -- packed weight slab
    v_ref    : VMEM (V_ROWS, 128)  -- packed biases / LN params / CLS token
    o_ref    : VMEM (bsz, OUT_DIM) -- projected CLS embeddings
    """
    n_aud = bsz * T
    n_rows = n_aud + bsz            # audio rows first, then one CLS row per batch

    # ---- build src rows in VMEM: [audio frames | CLS tokens] ------------------
    cls_row = v_ref[VROW_CLS:VROW_CLS + 1, 0:D_MODEL]              # (1, D)
    cls_rows = jnp.broadcast_to(cls_row, (bsz, D_MODEL))           # (B, D)
    x = jnp.concatenate([audio_ref[...], cls_rows], axis=0)        # (n_rows, D)
    x = x.astype(jnp.float32)

    # ---- additive attention mask: block-diagonal per batch + key padding ------
    # row/col index i: i < n_aud  -> audio frame, batch = #{b>=1 : i >= b*T}
    #                  i >= n_aud -> CLS of batch (i - n_aud), always a valid key
    r = lax.broadcasted_iota(jnp.int32, (n_rows, n_rows), 0)
    c = lax.broadcasted_iota(jnp.int32, (n_rows, n_rows), 1)

    def batch_id(idx):
        b = jnp.zeros_like(idx)
        for bb in range(1, bsz):                   # static unroll (bsz is tiny)
            b = b + (idx >= bb * T).astype(jnp.int32)
        return jnp.where(idx < n_aud, b, idx - n_aud)

    key_ok = c >= n_aud                            # CLS keys always valid
    for bb in range(bsz):
        key_ok = key_ok | ((c >= bb * T) & (c < bb * T + lens_ref[bb]))
    allowed = (batch_id(r) == batch_id(c)) & key_ok
    # NOTE: every query row always has >=1 allowed key (its own batch's CLS),
    # so the softmax can never see a fully-masked row -> no NaN risk.
    mask = jnp.where(allowed, jnp.float32(0.0), jnp.float32(-1e9))

    # ---- fused QKV projection --------------------------------------------------
    wqkv = w_ref[ROW_WQKV:ROW_WQKV + D_MODEL, 0:3 * D_MODEL]       # (D, 3D)
    bqkv = v_ref[VROW_BQKV:VROW_BQKV + 1, 0:3 * D_MODEL]           # (1, 3D)
    qkv = jnp.dot(x, wqkv, preferred_element_type=jnp.float32) + bqkv  # (n_rows, 3D)

    def take_heads(col0):                          # (H, n_rows, D_HEAD)
        return jnp.stack(
            [qkv[:, col0 + h * D_HEAD: col0 + (h + 1) * D_HEAD]
             for h in range(N_HEADS)], axis=0)

    qh = take_heads(0)
    kh = take_heads(D_MODEL)
    vh = take_heads(2 * D_MODEL)

    # ---- multi-head self attention, all heads & all batches in one shot -------
    scale = 1.0 / (D_HEAD ** 0.5)
    s = jnp.einsum('hqd,hkd->hqk', qh, kh,
                   preferred_element_type=jnp.float32) * scale     # (H, R, R)
    s = s + mask[None, :, :]
    s = s - jnp.max(s, axis=-1, keepdims=True)
    p = jnp.exp(s)
    p = p * pl.reciprocal(jnp.sum(p, axis=-1, keepdims=True), approx=True)
    ctx = jnp.einsum('hqk,hkd->hqd', p, vh,
                     preferred_element_type=jnp.float32)           # (H, R, Dh)
    attn = jnp.concatenate([ctx[h] for h in range(N_HEADS)], axis=-1)  # (R, D)

    wo = w_ref[ROW_WO:ROW_WO + D_MODEL, 0:D_MODEL]
    bo = v_ref[VROW_BO:VROW_BO + 1, 0:D_MODEL]
    attn = jnp.dot(attn, wo, preferred_element_type=jnp.float32) + bo

    # ---- residual + LayerNorm 1 (post-LN, nn.TransformerEncoderLayer default) -
    g1 = v_ref[VROW_G1:VROW_G1 + 1, 0:D_MODEL]
    be1 = v_ref[VROW_BE1:VROW_BE1 + 1, 0:D_MODEL]
    y = x + attn
    mu = jnp.mean(y, axis=-1, keepdims=True)
    var = jnp.mean((y - mu) ** 2, axis=-1, keepdims=True)
    y = (y - mu) * lax.rsqrt(var + LN_EPS) * g1 + be1

    # ---- feed-forward (ReLU) ---------------------------------------------------
    w1 = w_ref[ROW_W1:ROW_W1 + D_MODEL, 0:D_FF]
    b1 = v_ref[VROW_B1:VROW_B1 + 1, 0:D_FF]
    w2 = w_ref[ROW_W2:ROW_W2 + D_FF, 0:D_MODEL]
    b2 = v_ref[VROW_B2:VROW_B2 + 1, 0:D_MODEL]
    h1 = jnp.maximum(jnp.dot(y, w1, preferred_element_type=jnp.float32) + b1, 0.0)
    h2 = jnp.dot(h1, w2, preferred_element_type=jnp.float32) + b2

    # ---- residual + LayerNorm 2 ------------------------------------------------
    g2 = v_ref[VROW_G2:VROW_G2 + 1, 0:D_MODEL]
    be2 = v_ref[VROW_BE2:VROW_BE2 + 1, 0:D_MODEL]
    z = y + h2
    mu2 = jnp.mean(z, axis=-1, keepdims=True)
    var2 = jnp.mean((z - mu2) ** 2, axis=-1, keepdims=True)
    z = (z - mu2) * lax.rsqrt(var2 + LN_EPS) * g2 + be2

    # ---- take all CLS rows and apply the final linear projection (one store) --
    wp = w_ref[ROW_WP:ROW_WP + D_MODEL, 0:OUT_DIM]
    bp = v_ref[VROW_BP:VROW_BP + 1, 0:OUT_DIM]
    cls_out = z[n_aud:n_rows, :]                                   # (B, D)
    o_ref[...] = (jnp.dot(cls_out, wp, preferred_element_type=jnp.float32)
                  + bp).astype(o_ref.dtype)


# --------------------------- wrapper -------------------------------------------
@jax.jit
def proj_net_forward(audio_feat, audio_len, w_all, v_all):
    """audio_feat: (B, T, D_MODEL) f32, audio_len: (B,) int32 -> (B, OUT_DIM) f32."""
    bsz, t, d = audio_feat.shape
    audio2d = audio_feat.reshape(bsz * t, d)        # leading-dim merge: free reshape
    lens = audio_len.astype(jnp.int32)
    n_rows = bsz * t + bsz

    flops = (2 * n_rows * D_MODEL * 3 * D_MODEL                 # QKV
             + 2 * N_HEADS * n_rows * n_rows * D_HEAD * 2       # scores + context
             + 2 * n_rows * D_MODEL * D_MODEL                   # output projection
             + 2 * n_rows * D_MODEL * D_FF * 2                  # FFN
             + 2 * bsz * D_MODEL * OUT_DIM)                     # final linear_proj
    transcendentals = N_HEADS * n_rows * n_rows                 # softmax exp
    bytes_accessed = 4 * (audio2d.size + w_all.size + v_all.size
                          + lens.size + bsz * OUT_DIM)

    return pl.pallas_call(
        functools.partial(proj_net_kernel, bsz=bsz),
        out_shape=jax.ShapeDtypeStruct((bsz, OUT_DIM), jnp.float32),
        in_specs=[
            pl.BlockSpec(memory_space=pltpu.MemorySpace.SMEM),   # lens (scalars)
            pl.BlockSpec(memory_space=pltpu.MemorySpace.VMEM),   # audio rows
            pl.BlockSpec(memory_space=pltpu.MemorySpace.VMEM),   # packed weights
            pl.BlockSpec(memory_space=pltpu.MemorySpace.VMEM),   # packed biases/LN/CLS
        ],
        out_specs=pl.BlockSpec(memory_space=pltpu.MemorySpace.VMEM),
        cost_estimate=pl.CostEstimate(flops=flops,
                                      transcendentals=transcendentals,
                                      bytes_accessed=bytes_accessed),
    )(lens, audio2d, w_all, v_all)


# --------------------------- deterministic packed params ------------------------
def init_params(key):
    ks = jax.random.split(key, 8)

    def w(k, shape, fan_in):
        return jax.random.normal(k, shape, jnp.float32) / jnp.sqrt(jnp.float32(fan_in))

    wq = w(ks[1], (D_MODEL, D_MODEL), D_MODEL)
    wk = w(ks[2], (D_MODEL, D_MODEL), D_MODEL)
    wv = w(ks[3], (D_MODEL, D_MODEL), D_MODEL)
    wo = w(ks[4], (D_MODEL, D_MODEL), D_MODEL)
    w1 = w(ks[5], (D_MODEL, D_FF), D_MODEL)
    w2 = w(ks[6], (D_FF, D_MODEL), D_FF)
    wp = w(ks[7], (D_MODEL, OUT_DIM), D_MODEL)
    cls = jax.random.normal(ks[0], (1, D_MODEL), jnp.float32)

    w_all = jnp.zeros((W_ROWS, W_COLS), jnp.float32)
    w_all = w_all.at[ROW_WQKV:ROW_WQKV + D_MODEL, 0:D_MODEL].set(wq)
    w_all = w_all.at[ROW_WQKV:ROW_WQKV + D_MODEL, D_MODEL:2 * D_MODEL].set(wk)
    w_all = w_all.at[ROW_WQKV:ROW_WQKV + D_MODEL, 2 * D_MODEL:3 * D_MODEL].set(wv)
    w_all = w_all.at[ROW_WO:ROW_WO + D_MODEL, 0:D_MODEL].set(wo)
    w_all = w_all.at[ROW_W1:ROW_W1 + D_MODEL, 0:D_FF].set(w1)
    w_all = w_all.at[ROW_W2:ROW_W2 + D_FF, 0:D_MODEL].set(w2)
    w_all = w_all.at[ROW_WP:ROW_WP + D_MODEL, 0:OUT_DIM].set(wp)

    v_all = jnp.zeros((V_ROWS, V_COLS), jnp.float32)   # biases zero by default
    v_all = v_all.at[VROW_G1, 0:D_MODEL].set(1.0)      # LN1 gain
    v_all = v_all.at[VROW_G2, 0:D_MODEL].set(1.0)      # LN2 gain
    v_all = v_all.at[VROW_CLS, 0:D_MODEL].set(cls[0])  # CLS token
    return w_all, v_all


# --------------------------- main -----------------------------------------------
if __name__ == "__main__":
    key = jax.random.PRNGKey(0)
    k_feat, k_params = jax.random.split(key)

    audio_feat = jax.random.normal(k_feat, (BSZ, T, D_MODEL), jnp.float32)
    audio_len = jnp.array([T, 5], dtype=jnp.int32)   # valid lengths per batch elem

    w_all, v_all = init_params(k_params)

    out = proj_net_forward(audio_feat, audio_len, w_all, v_all)
    out = jax.block_until_ready(out)

    assert out.shape == (BSZ, OUT_DIM), out.shape
    assert jnp.all(jnp.isfinite(out)), "non-finite output"
    print("KERNEL_OK")
</pallas_src>

<mosaic_0001>
module attributes {stable_mosaic.version = 11 : i64} {
  func.func @proj_net_kernel(%arg0: memref<2xi32, #tpu.memory_space<smem>>, %arg1: memref<16x32xf32, #tpu.memory_space<vmem>>, %arg2: memref<192x128xf32, #tpu.memory_space<vmem>>, %arg3: memref<16x128xf32, #tpu.memory_space<vmem>>, %arg4: memref<2x16xf32, #tpu.memory_space<vmem>>) attributes {dimension_semantics = [], scalar_prefetch = 0 : i64, scratch_operands = 0 : i64, tpu.core_type = #tpu.core_type<tc>} {
    %c9 = arith.constant 9 : index
    %c0 = arith.constant 0 : index
    %0 = vector.load %arg3[%c9, %c0] : memref<16x128xf32, #tpu.memory_space<vmem>>, vector<1x32xf32>
    %1 = vector.shape_cast %0 : vector<1x32xf32> to vector<1x32xf32>
    %2 = vector.broadcast %1 : vector<1x32xf32> to vector<2x32xf32>
    %c0_0 = arith.constant 0 : index
    %c0_1 = arith.constant 0 : index
    %3 = vector.load %arg1[%c0_0, %c0_1] : memref<16x32xf32, #tpu.memory_space<vmem>>, vector<16x32xf32>
    %4 = tpu.concatenate %3, %2 in 0 : vector<16x32xf32>, vector<2x32xf32> -> vector<18x32xf32>
    %5 = tpu.iota {dimensions = array<i32: 0>} : vector<18x18xi32>
    %6 = tpu.iota {dimensions = array<i32: 1>} : vector<18x18xi32>
    %c16_i32 = arith.constant 16 : i32
    %7 = vector.broadcast %c16_i32 : i32 to vector<18x18xi32>
    %8 = arith.cmpi sge, %6, %7 : vector<18x18xi32>
    %c0_i32 = arith.constant 0 : i32
    %9 = vector.broadcast %c0_i32 : i32 to vector<18x18xi32>
    %10 = arith.cmpi sge, %6, %9 : vector<18x18xi32>
    %c0_2 = arith.constant 0 : index
    %11 = memref.load %arg0[%c0_2] : memref<2xi32, #tpu.memory_space<smem>>
    %c0_i32_3 = arith.constant 0 : i32
    %12 = arith.addi %c0_i32_3, %11 : i32
    %13 = vector.broadcast %12 : i32 to vector<18x18xi32>
    %14 = arith.cmpi slt, %6, %13 : vector<18x18xi32>
    %15 = arith.andi %10, %14 : vector<18x18xi1>
    %16 = arith.ori %8, %15 : vector<18x18xi1>
    %c8_i32 = arith.constant 8 : i32
    %17 = vector.broadcast %c8_i32 : i32 to vector<18x18xi32>
    %18 = arith.cmpi sge, %6, %17 : vector<18x18xi32>
    %c1 = arith.constant 1 : index
    %19 = memref.load %arg0[%c1] : memref<2xi32, #tpu.memory_space<smem>>
    %c8_i32_4 = arith.constant 8 : i32
    %20 = arith.addi %c8_i32_4, %19 : i32
    %21 = vector.broadcast %20 : i32 to vector<18x18xi32>
    %22 = arith.cmpi slt, %6, %21 : vector<18x18xi32>
    %23 = arith.andi %18, %22 : vector<18x18xi1>
    %24 = arith.ori %16, %23 : vector<18x18xi1>
    %c0_i32_5 = arith.constant 0 : i32
    %25 = vector.broadcast %c0_i32_5 : i32 to vector<18x18xi32>
    %c8_i32_6 = arith.constant 8 : i32
    %26 = vector.broadcast %c8_i32_6 : i32 to vector<18x18xi32>
    %27 = arith.cmpi sge, %5, %26 : vector<18x18xi32>
    %28 = arith.extui %27 : vector<18x18xi1> to vector<18x18xi32>
    %29 = arith.addi %25, %28 : vector<18x18xi32>
    %c16_i32_7 = arith.constant 16 : i32
    %30 = vector.broadcast %c16_i32_7 : i32 to vector<18x18xi32>
    %31 = arith.cmpi slt, %5, %30 : vector<18x18xi32>
    %c16_i32_8 = arith.constant 16 : i32
    %32 = vector.broadcast %c16_i32_8 : i32 to vector<18x18xi32>
    %33 = arith.subi %5, %32 : vector<18x18xi32>
    %34 = arith.select %31, %29, %33 : vector<18x18xi1>, vector<18x18xi32>
    %c0_i32_9 = arith.constant 0 : i32
    %35 = vector.broadcast %c0_i32_9 : i32 to vector<18x18xi32>
    %c8_i32_10 = arith.constant 8 : i32
    %36 = vector.broadcast %c8_i32_10 : i32 to vector<18x18xi32>
    %37 = arith.cmpi sge, %6, %36 : vector<18x18xi32>
    %38 = arith.extui %37 : vector<18x18xi1> to vector<18x18xi32>
    %39 = arith.addi %35, %38 : vector<18x18xi32>
    %c16_i32_11 = arith.constant 16 : i32
    %40 = vector.broadcast %c16_i32_11 : i32 to vector<18x18xi32>
    %41 = arith.cmpi slt, %6, %40 : vector<18x18xi32>
    %c16_i32_12 = arith.constant 16 : i32
    %42 = vector.broadcast %c16_i32_12 : i32 to vector<18x18xi32>
    %43 = arith.subi %6, %42 : vector<18x18xi32>
    %44 = arith.select %41, %39, %43 : vector<18x18xi1>, vector<18x18xi32>
    %45 = arith.cmpi eq, %34, %44 : vector<18x18xi32>
    %46 = arith.andi %45, %24 : vector<18x18xi1>
    %cst = arith.constant 0.000000e+00 : f32
    %cst_13 = arith.constant -1.000000e+09 : f32
    %47 = vector.broadcast %cst : f32 to vector<18x18xf32>
    %48 = vector.broadcast %cst_13 : f32 to vector<18x18xf32>
    %49 = arith.select %46, %47, %48 : vector<18x18xi1>, vector<18x18xf32>
    %c0_14 = arith.constant 0 : index
    %c0_15 = arith.constant 0 : index
    %50 = vector.load %arg2[%c0_14, %c0_15] : memref<192x128xf32, #tpu.memory_space<vmem>>, vector<32x96xf32>
    %c0_16 = arith.constant 0 : index
    %c0_17 = arith.constant 0 : index
    %51 = vector.load %arg3[%c0_16, %c0_17] : memref<16x128xf32, #tpu.memory_space<vmem>>, vector<1x96xf32>
    %cst_18 = arith.constant dense<0.000000e+00> : vector<18x96xf32>
    %52 = tpu.matmul %4, %50, %cst_18 {dimension_numbers = #tpu.dot_dimension_numbers<[1], [0], [0], [1], [0, 0, 1, 1], [], []>} : vector<18x32xf32>, vector<32x96xf32>, vector<18x96xf32> -> vector<18x96xf32>
    %53 = vector.broadcast %51 : vector<1x96xf32> to vector<18x96xf32>
    %54 = arith.addf %52, %53 : vector<18x96xf32>
    %55 = vector.extract_strided_slice %54 {offsets = [0, 0], sizes = [18, 8], strides = [1, 1]} : vector<18x96xf32> to vector<18x8xf32>
    %56 = vector.extract_strided_slice %54 {offsets = [0, 8], sizes = [18, 8], strides = [1, 1]} : vector<18x96xf32> to vector<18x8xf32>
    %57 = vector.extract_strided_slice %54 {offsets = [0, 16], sizes = [18, 8], strides = [1, 1]} : vector<18x96xf32> to vector<18x8xf32>
    %58 = vector.extract_strided_slice %54 {offsets = [0, 24], sizes = [18, 8], strides = [1, 1]} : vector<18x96xf32> to vector<18x8xf32>
    %59 = vector.shape_cast %55 : vector<18x8xf32> to vector<1x18x8xf32>
    %60 = vector.shape_cast %56 : vector<18x8xf32> to vector<1x18x8xf32>
    %61 = vector.shape_cast %57 : vector<18x8xf32> to vector<1x18x8xf32>
    %62 = vector.shape_cast %58 : vector<18x8xf32> to vector<1x18x8xf32>
    %63 = tpu.concatenate %59, %60, %61, %62 in 0 : vector<1x18x8xf32>, vector<1x18x8xf32>, vector<1x18x8xf32>, vector<1x18x8xf32> -> vector<4x18x8xf32>
    %64 = vector.extract_strided_slice %54 {offsets = [0, 32], sizes = [18, 8], strides = [1, 1]} : vector<18x96xf32> to vector<18x8xf32>
    %65 = vector.extract_strided_slice %54 {offsets = [0, 40], sizes = [18, 8], strides = [1, 1]} : vector<18x96xf32> to vector<18x8xf32>
    %66 = vector.extract_strided_slice %54 {offsets = [0, 48], sizes = [18, 8], strides = [1, 1]} : vector<18x96xf32> to vector<18x8xf32>
    %67 = vector.extract_strided_slice %54 {offsets = [0, 56], sizes = [18, 8], strides = [1, 1]} : vector<18x96xf32> to vector<18x8xf32>
    %68 = vector.shape_cast %64 : vector<18x8xf32> to vector<1x18x8xf32>
    %69 = vector.shape_cast %65 : vector<18x8xf32> to vector<1x18x8xf32>
    %70 = vector.shape_cast %66 : vector<18x8xf32> to vector<1x18x8xf32>
    %71 = vector.shape_cast %67 : vector<18x8xf32> to vector<1x18x8xf32>
    %72 = tpu.concatenate %68, %69, %70, %71 in 0 : vector<1x18x8xf32>, vector<1x18x8xf32>, vector<1x18x8xf32>, vector<1x18x8xf32> -> vector<4x18x8xf32>
    %73 = vector.extract_strided_slice %54 {offsets = [0, 64], sizes = [18, 8], strides = [1, 1]} : vector<18x96xf32> to vector<18x8xf32>
    %74 = vector.extract_strided_slice %54 {offsets = [0, 72], sizes = [18, 8], strides = [1, 1]} : vector<18x96xf32> to vector<18x8xf32>
    %75 = vector.extract_strided_slice %54 {offsets = [0, 80], sizes = [18, 8], strides = [1, 1]} : vector<18x96xf32> to vector<18x8xf32>
    %76 = vector.extract_strided_slice %54 {offsets = [0, 88], sizes = [18, 8], strides = [1, 1]} : vector<18x96xf32> to vector<18x8xf32>
    %77 = vector.shape_cast %73 : vector<18x8xf32> to vector<1x18x8xf32>
    %78 = vector.shape_cast %74 : vector<18x8xf32> to vector<1x18x8xf32>
    %79 = vector.shape_cast %75 : vector<18x8xf32> to vector<1x18x8xf32>
    %80 = vector.shape_cast %76 : vector<18x8xf32> to vector<1x18x8xf32>
    %81 = tpu.concatenate %77, %78, %79, %80 in 0 : vector<1x18x8xf32>, vector<1x18x8xf32>, vector<1x18x8xf32>, vector<1x18x8xf32> -> vector<4x18x8xf32>
    "tpu.trace_start"() <{level = 10 : i32, message = "hqd,hkd->hqk"}> : () -> ()
    %cst_19 = arith.constant dense<0.000000e+00> : vector<4x18x18xf32>
    %82 = tpu.matmul %63, %72, %cst_19 {dimension_numbers = #tpu.dot_dimension_numbers<[2], [2], [1], [1], [0, 0, 0, 1, 1, 1], [0], [0]>} : vector<4x18x8xf32>, vector<4x18x8xf32>, vector<4x18x18xf32> -> vector<4x18x18xf32>
    "tpu.trace_stop"() : () -> ()
    %cst_20 = arith.constant 0.353553385 : f32
    %83 = vector.broadcast %cst_20 : f32 to vector<4x18x18xf32>
    %84 = arith.mulf %82, %83 : vector<4x18x18xf32>
    %85 = vector.shape_cast %49 : vector<18x18xf32> to vector<1x18x18xf32>
    %86 = vector.broadcast %85 : vector<1x18x18xf32> to vector<4x18x18xf32>
    %87 = arith.addf %84, %86 : vector<4x18x18xf32>
    %cst_21 = arith.constant dense<0xFF800000> : vector<4x18xf32>
    %88 = vector.multi_reduction <maximumf>, %87, %cst_21 [2] : vector<4x18x18xf32> to vector<4x18xf32>
    %89 = vector.shape_cast %88 : vector<4x18xf32> to vector<4x18x1xf32>
    %90 = vector.broadcast %89 : vector<4x18x1xf32> to vector<4x18x18xf32>
    %91 = arith.subf %87, %90 : vector<4x18x18xf32>
    %92 = math.exp %91 : vector<4x18x18xf32>
    %cst_22 = arith.constant dense<0.000000e+00> : vector<4x18xf32>
    %93 = vector.multi_reduction <add>, %92, %cst_22 [2] : vector<4x18x18xf32> to vector<4x18xf32>
    %94 = vector.shape_cast %93 : vector<4x18xf32> to vector<4x18x1xf32>
    %95 = tpu.reciprocal %94 {approx = true} : vector<4x18x1xf32> -> vector<4x18x1xf32>
    %96 = vector.broadcast %95 : vector<4x18x1xf32> to vector<4x18x18xf32>
    %97 = arith.mulf %92, %96 : vector<4x18x18xf32>
    "tpu.trace_start"() <{level = 10 : i32, message = "hqk,hkd->hqd"}> : () -> ()
    %cst_23 = arith.constant dense<0.000000e+00> : vector<4x18x8xf32>
    %98 = tpu.matmul %97, %81, %cst_23 {dimension_numbers = #tpu.dot_dimension_numbers<[2], [1], [1], [2], [0, 0, 0, 1, 1, 2], [0], [0]>} : vector<4x18x18xf32>, vector<4x18x8xf32>, vector<4x18x8xf32> -> vector<4x18x8xf32>
    "tpu.trace_stop"() : () -> ()
    %99 = vector.extract_strided_slice %98 {offsets = [0, 0, 0], sizes = [1, 18, 8], strides = [1, 1, 1]} : vector<4x18x8xf32> to vector<1x18x8xf32>
    %100 = vector.shape_cast %99 : vector<1x18x8xf32> to vector<18x8xf32>
    %101 = vector.extract_strided_slice %98 {offsets = [1, 0, 0], sizes = [1, 18, 8], strides = [1, 1, 1]} : vector<4x18x8xf32> to vector<1x18x8xf32>
    %102 = vector.shape_cast %101 : vector<1x18x8xf32> to vector<18x8xf32>
    %103 = vector.extract_strided_slice %98 {offsets = [2, 0, 0], sizes = [1, 18, 8], strides = [1, 1, 1]} : vector<4x18x8xf32> to vector<1x18x8xf32>
    %104 = vector.shape_cast %103 : vector<1x18x8xf32> to vector<18x8xf32>
    %105 = vector.extract_strided_slice %98 {offsets = [3, 0, 0], sizes = [1, 18, 8], strides = [1, 1, 1]} : vector<4x18x8xf32> to vector<1x18x8xf32>
    %106 = vector.shape_cast %105 : vector<1x18x8xf32> to vector<18x8xf32>
    %107 = tpu.concatenate %100, %102, %104, %106 in 1 : vector<18x8xf32>, vector<18x8xf32>, vector<18x8xf32>, vector<18x8xf32> -> vector<18x32xf32>
    %c32 = arith.constant 32 : index
    %c0_24 = arith.constant 0 : index
    %108 = vector.load %arg2[%c32, %c0_24] : memref<192x128xf32, #tpu.memory_space<vmem>>, vector<32x32xf32>
    %c1_25 = arith.constant 1 : index
    %c0_26 = arith.constant 0 : index
    %109 = vector.load %arg3[%c1_25, %c0_26] : memref<16x128xf32, #tpu.memory_space<vmem>>, vector<1x32xf32>
    %cst_27 = arith.constant dense<0.000000e+00> : vector<18x32xf32>
    %110 = tpu.matmul %107, %108, %cst_27 {dimension_numbers = #tpu.dot_dimension_numbers<[1], [0], [0], [1], [0, 0, 1, 1], [], []>} : vector<18x32xf32>, vector<32x32xf32>, vector<18x32xf32> -> vector<18x32xf32>
    %111 = vector.broadcast %109 : vector<1x32xf32> to vector<18x32xf32>
    %112 = arith.addf %110, %111 : vector<18x32xf32>
    %c2 = arith.constant 2 : index
    %c0_28 = arith.constant 0 : index
    %113 = vector.load %arg3[%c2, %c0_28] : memref<16x128xf32, #tpu.memory_space<vmem>>, vector<1x32xf32>
    %c3 = arith.constant 3 : index
    %c0_29 = arith.constant 0 : index
    %114 = vector.load %arg3[%c3, %c0_29] : memref<16x128xf32, #tpu.memory_space<vmem>>, vector<1x32xf32>
    %115 = arith.addf %4, %112 : vector<18x32xf32>
    %cst_30 = arith.constant dense<0.000000e+00> : vector<18xf32>
    %116 = vector.multi_reduction <add>, %115, %cst_30 [1] : vector<18x32xf32> to vector<18xf32>
    %117 = vector.shape_cast %116 : vector<18xf32> to vector<18x1xf32>
    %cst_31 = arith.constant 3.200000e+01 : f32
    %118 = vector.broadcast %cst_31 : f32 to vector<18x1xf32>
    %119 = arith.divf %117, %118 : vector<18x1xf32>
    %120 = vector.broadcast %119 : vector<18x1xf32> to vector<18x32xf32>
    %121 = arith.subf %115, %120 : vector<18x32xf32>
    %122 = arith.mulf %121, %121 : vector<18x32xf32>
    %cst_32 = arith.constant dense<0.000000e+00> : vector<18xf32>
    %123 = vector.multi_reduction <add>, %122, %cst_32 [1] : vector<18x32xf32> to vector<18xf32>
    %124 = vector.shape_cast %123 : vector<18xf32> to vector<18x1xf32>
    %cst_33 = arith.constant 3.200000e+01 : f32
    %125 = vector.broadcast %cst_33 : f32 to vector<18x1xf32>
    %126 = arith.divf %124, %125 : vector<18x1xf32>
    %127 = vector.broadcast %119 : vector<18x1xf32> to vector<18x32xf32>
    %128 = arith.subf %115, %127 : vector<18x32xf32>
    %cst_34 = arith.constant 9.99999974E-6 : f32
    %129 = vector.broadcast %cst_34 : f32 to vector<18x1xf32>
    %130 = arith.addf %126, %129 : vector<18x1xf32>
    %131 = math.rsqrt %130 : vector<18x1xf32>
    %132 = vector.broadcast %131 : vector<18x1xf32> to vector<18x32xf32>
    %133 = arith.mulf %128, %132 : vector<18x32xf32>
    %134 = vector.broadcast %113 : vector<1x32xf32> to vector<18x32xf32>
    %135 = arith.mulf %133, %134 : vector<18x32xf32>
    %136 = vector.broadcast %114 : vector<1x32xf32> to vector<18x32xf32>
    %137 = arith.addf %135, %136 : vector<18x32xf32>
    %c64 = arith.constant 64 : index
    %c0_35 = arith.constant 0 : index
    %138 = vector.load %arg2[%c64, %c0_35] : memref<192x128xf32, #tpu.memory_space<vmem>>, vector<32x64xf32>
    %c4 = arith.constant 4 : index
    %c0_36 = arith.constant 0 : index
    %139 = vector.load %arg3[%c4, %c0_36] : memref<16x128xf32, #tpu.memory_space<vmem>>, vector<1x64xf32>
    %c96 = arith.constant 96 : index
    %c0_37 = arith.constant 0 : index
    %140 = vector.load %arg2[%c96, %c0_37] : memref<192x128xf32, #tpu.memory_space<vmem>>, vector<64x32xf32>
    %c5 = arith.constant 5 : index
    %c0_38 = arith.constant 0 : index
    %141 = vector.load %arg3[%c5, %c0_38] : memref<16x128xf32, #tpu.memory_space<vmem>>, vector<1x32xf32>
    %cst_39 = arith.constant dense<0.000000e+00> : vector<18x64xf32>
    %142 = tpu.matmul %137, %138, %cst_39 {dimension_numbers = #tpu.dot_dimension_numbers<[1], [0], [0], [1], [0, 0, 1, 1], [], []>} : vector<18x32xf32>, vector<32x64xf32>, vector<18x64xf32> -> vector<18x64xf32>
    %143 = vector.broadcast %139 : vector<1x64xf32> to vector<18x64xf32>
    %144 = arith.addf %142, %143 : vector<18x64xf32>
    %cst_40 = arith.constant 0.000000e+00 : f32
    %145 = vector.broadcast %cst_40 : f32 to vector<18x64xf32>
    %146 = arith.maximumf %144, %145 : vector<18x64xf32>
    %cst_41 = arith.constant dense<0.000000e+00> : vector<18x32xf32>
    %147 = tpu.matmul %146, %140, %cst_41 {dimension_numbers = #tpu.dot_dimension_numbers<[1], [0], [0], [1], [0, 0, 1, 1], [], []>} : vector<18x64xf32>, vector<64x32xf32>, vector<18x32xf32> -> vector<18x32xf32>
    %148 = vector.broadcast %141 : vector<1x32xf32> to vector<18x32xf32>
    %149 = arith.addf %147, %148 : vector<18x32xf32>
    %c6 = arith.constant 6 : index
    %c0_42 = arith.constant 0 : index
    %150 = vector.load %arg3[%c6, %c0_42] : memref<16x128xf32, #tpu.memory_space<vmem>>, vector<1x32xf32>
    %c7 = arith.constant 7 : index
    %c0_43 = arith.constant 0 : index
    %151 = vector.load %arg3[%c7, %c0_43] : memref<16x128xf32, #tpu.memory_space<vmem>>, vector<1x32xf32>
    %152 = arith.addf %137, %149 : vector<18x32xf32>
    %cst_44 = arith.constant dense<0.000000e+00> : vector<18xf32>
    %153 = vector.multi_reduction <add>, %152, %cst_44 [1] : vector<18x32xf32> to vector<18xf32>
    %154 = vector.shape_cast %153 : vector<18xf32> to vector<18x1xf32>
    %cst_45 = arith.constant 3.200000e+01 : f32
    %155 = vector.broadcast %cst_45 : f32 to vector<18x1xf32>
    %156 = arith.divf %154, %155 : vector<18x1xf32>
    %157 = vector.broadcast %156 : vector<18x1xf32> to vector<18x32xf32>
    %158 = arith.subf %152, %157 : vector<18x32xf32>
    %159 = arith.mulf %158, %158 : vector<18x32xf32>
    %cst_46 = arith.constant dense<0.000000e+00> : vector<18xf32>
    %160 = vector.multi_reduction <add>, %159, %cst_46 [1] : vector<18x32xf32> to vector<18xf32>
    %161 = vector.shape_cast %160 : vector<18xf32> to vector<18x1xf32>
    %cst_47 = arith.constant 3.200000e+01 : f32
    %162 = vector.broadcast %cst_47 : f32 to vector<18x1xf32>
    %163 = arith.divf %161, %162 : vector<18x1xf32>
    %164 = vector.broadcast %156 : vector<18x1xf32> to vector<18x32xf32>
    %165 = arith.subf %152, %164 : vector<18x32xf32>
    %cst_48 = arith.constant 9.99999974E-6 : f32
    %166 = vector.broadcast %cst_48 : f32 to vector<18x1xf32>
    %167 = arith.addf %163, %166 : vector<18x1xf32>
    %168 = math.rsqrt %167 : vector<18x1xf32>
    %169 = vector.broadcast %168 : vector<18x1xf32> to vector<18x32xf32>
    %170 = arith.mulf %165, %169 : vector<18x32xf32>
    %171 = vector.broadcast %150 : vector<1x32xf32> to vector<18x32xf32>
    %172 = arith.mulf %170, %171 : vector<18x32xf32>
    %173 = vector.broadcast %151 : vector<1x32xf32> to vector<18x32xf32>
    %174 = arith.addf %172, %173 : vector<18x32xf32>
    %c160 = arith.constant 160 : index
    %c0_49 = arith.constant 0 : index
    %175 = vector.load %arg2[%c160, %c0_49] : memref<192x128xf32, #tpu.memory_space<vmem>>, vector<32x16xf32>
    %c8 = arith.constant 8 : index
    %c0_50 = arith.constant 0 : index
    %176 = vector.load %arg3[%c8, %c0_50] : memref<16x128xf32, #tpu.memory_space<vmem>>, vector<1x16xf32>
    %177 = vector.extract_strided_slice %174 {offsets = [16, 0], sizes = [2, 32], strides = [1, 1]} : vector<18x32xf32> to vector<2x32xf32>
    %cst_51 = arith.constant dense<0.000000e+00> : vector<2x16xf32>
    %178 = tpu.matmul %177, %175, %cst_51 {dimension_numbers = #tpu.dot_dimension_numbers<[1], [0], [0], [1], [0, 0, 1, 1], [], []>} : vector<2x32xf32>, vector<32x16xf32>, vector<2x16xf32> -> vector<2x16xf32>
    %179 = vector.broadcast %176 : vector<1x16xf32> to vector<2x16xf32>
    %180 = arith.addf %178, %179 : vector<2x16xf32>
    %c0_52 = arith.constant 0 : index
    %c0_53 = arith.constant 0 : index
    %181 = vector.load %arg4[%c0_52, %c0_53] : memref<2x16xf32, #tpu.memory_space<vmem>>, vector<2x16xf32>
    tpu.vector_store %arg4[%c0_52, %c0_53], %180 {strides = array<i32>} : memref<2x16xf32, #tpu.memory_space<vmem>>, vector<2x16xf32>,
    return
  }
}

</mosaic_0001>

<llo_original>
// kernel: proj_net_forward.1
$region0: #{proj_net_forward.1}
  #allocation0 [shape = 'u32[]', space=smem, size = 0x4, offset = 0x4, fixed_abs, tag = 'smem constant byte address 0x4 - core index']
  #allocation1 [shape = 'u32[144,128]{1,0:T(1,128)}', space=vmem, size = 0x12000, scoped, tag = 'internal scratch']
  %s0 = inlined_call_operand.vmem [shape: s32[2], index: 0, kind: input, shape index: {}]
  %s1 = inlined_call_operand.hbm [shape: f32[16,32], index: 1, kind: input, shape index: {}]
  %s2 = inlined_call_operand.hbm [shape: f32[192,128], index: 2, kind: input, shape index: {}]
  %s3 = inlined_call_operand.hbm [shape: f32[16,128], index: 3, kind: input, shape index: {}]
  %s4 = inlined_call_operand.hbm [shape: f32[2,16], index: 4, kind: output, shape index: {}]
  %s5 = sld [smem:[#allocation0]]
  $region42: #{proj_net_forward.1} parent=0
    _
  %s7 = ssub.s32 1, %s5
  %s8 = scalar_select 0, %s7, %s5
  $region1: #{proj_net_forward.1} parent=0
    #allocation2 [shape = 'u8[512]{0}', space=smem, size = 0x200, scoped, tag = 'input window, operand 0, single buffered']
    #allocation3 [shape = 's32[1]{0}', space=sflag, size = 0x4, scoped, tag = 'scoped memory for proj_net_forward.1']
    #allocation4 [shape = 's32[1]{0}', space=sflag, size = 0x4, scoped, tag = 'scoped memory for proj_net_forward.1']
    #allocation5 [shape = 's32[1]{0}', space=sflag, size = 0x4, scoped, tag = 'scoped memory for proj_net_forward.1']
    #allocation6 [shape = 'u8[8192]{0}', space=vmem, size = 0x2000, scoped, tag = 'input window, operand 1, single buffered']
    #allocation7 [shape = 'u8[98304]{0}', space=vmem, size = 0x18000, scoped, tag = 'input window, operand 2, single buffered']
    #allocation8 [shape = 's32[1]{0}', space=sflag, size = 0x4, scoped, tag = 'scoped memory for proj_net_forward.1']
    #allocation9 [shape = 'u8[8192]{0}', space=vmem, size = 0x2000, scoped, tag = 'input window, operand 3, single buffered']
    #allocation10 [shape = 'u8[1024]{0}', space=vmem, size = 0x400, scoped, tag = 'output window, operand 0, single buffered']
    %9 = vsyncpa [#allocation5], 0
    %10 = vsyncpa [#allocation3], 0
    %11 = vsyncpa [#allocation8], 0
    %12 = vsyncpa [#allocation4], 0
    // Predicated region
    $region2: #{proj_net_forward.1} parent=1 // pred_check
      _
    $region3: #{proj_net_forward.1} parent=1 // pred_check_branch
      %14 = sbr.rel (0) target = $region5
    $region4: #{proj_net_forward.1} parent=1 // pred_region
      %s16 = ssub.s32 16, 16
      %17 = vsyncadd [#allocation5], %s16
      %s19 = sshll.u32 %s0, 4
      %s20 = int_to_ptr.vmem [resolvable:$true] %s19
      %22 = dma.vmem_to_smem %s20, 16, [#allocation2], [#allocation5]
    $region5: #{proj_net_forward.1} parent=1 // pred_fallthru
      _
    // Predicated region
    $region6: #{proj_net_forward.1} parent=1 // pred_check
      _
    $region7: #{proj_net_forward.1} parent=1 // pred_check_branch
      %24 = sbr.rel (0) target = $region9
    $region8: #{proj_net_forward.1} parent=1 // pred_region
      %s26 = ssub.s32 256, 256
      %27 = vsyncadd [#allocation3], %s26
      %s28 = sshll.u32 [#allocation6], 4
      %s29 = int_to_ptr.vmem [resolvable:$true] %s28
      %34 = dma.hbm_to_vmem [thread:$0]  %s1, 256, %s29, [#allocation3], 128, 128, 8
    $region9: #{proj_net_forward.1} parent=1 // pred_fallthru
      _
    // Predicated region
    $region10: #{proj_net_forward.1} parent=1 // pred_check
      _
    $region11: #{proj_net_forward.1} parent=1 // pred_check_branch
      %36 = sbr.rel (0) target = $region13
    $region12: #{proj_net_forward.1} parent=1 // pred_region
      %s38 = ssub.s32 3072, 3072
      %39 = vsyncadd [#allocation8], %s38
      %s40 = sshll.u32 [#allocation7], 4
      %s41 = int_to_ptr.vmem [resolvable:$true] %s40
      %46 = dma.hbm_to_vmem [thread:$0]  %s2, 3072, %s41, [#allocation8], 128, 128, 8
    $region13: #{proj_net_forward.1} parent=1 // pred_fallthru
      _
    // Predicated region
    $region14: #{proj_net_forward.1} parent=1 // pred_check
      _
    $region15: #{proj_net_forward.1} parent=1 // pred_check_branch
      %48 = sbr.rel (0) target = $region17
    $region16: #{proj_net_forward.1} parent=1 // pred_region
      %s50 = ssub.s32 256, 256
      %51 = vsyncadd [#allocation8], %s50
      %s52 = sshll.u32 [#allocation9], 4
      %s53 = int_to_ptr.vmem [resolvable:$true] %s52
      %58 = dma.hbm_to_vmem [thread:$0]  %s3, 256, %s53, [#allocation8], 128, 128, 8
    $region17: #{proj_net_forward.1} parent=1 // pred_fallthru
      _
    // Predicated region
    $region18: #{proj_net_forward.1} parent=1 // pred_check
      _
    $region19: #{proj_net_forward.1} parent=1 // pred_check_branch
      %60 = sbr.rel (0) target = $region21
    $region20: #{proj_net_forward.1} parent=1 // pred_region
      %61 = dma.done [#allocation5], 16
    $region21: #{proj_net_forward.1} parent=1 // pred_fallthru
      _
    // Predicated region
    $region22: #{proj_net_forward.1} parent=1 // pred_check
      _
    $region23: #{proj_net_forward.1} parent=1 // pred_check_branch
      %63 = sbr.rel (0) target = $region25
    $region24: #{proj_net_forward.1} parent=1 // pred_region
      %64 = dma.done [#allocation3], 256
    $region25: #{proj_net_forward.1} parent=1 // pred_fallthru
      _
    // Predicated region
    $region26: #{proj_net_forward.1} parent=1 // pred_check
      _
    $region27: #{proj_net_forward.1} parent=1 // pred_check_branch
      %66 = sbr.rel (0) target = $region29
    $region28: #{proj_net_forward.1} parent=1 // pred_region
      %67 = dma.done [#allocation8], 3072
    $region29: #{proj_net_forward.1} parent=1 // pred_fallthru
      _
    // Predicated region
    $region30: #{proj_net_forward.1} parent=1 // pred_check
      _
    $region31: #{proj_net_forward.1} parent=1 // pred_check_branch
      %69 = sbr.rel (0) target = $region33
    $region32: #{proj_net_forward.1} parent=1 // pred_region
      %70 = dma.done [#allocation8], 256
    $region33: #{proj_net_forward.1} parent=1 // pred_fallthru
      _
    %71 = sfence
    %v72 = vld [vmem:[#allocation9 + $0x9] sm:$0x1]
    %v73 = vlaneseq
    %v74 = vshrl.u32 %v73, 7
    %v75 = vsub.s32 0, %v74
    %v76 = vrot.slane %v72, %v75
    %v77 = vld [vmem:[#allocation6] sm:$0xff]
    %v78 = vld [vmem:[#allocation6 + $0x8] sm:$0xff]
    %v79 = vlaneseq
    %v80 = vshrl.u32 %v79, 7
    %v81 = vadd.s32 %v80, 8
    %v82 = vadd.s32 %v80, 16
    %v83 = vlaneseq
    %v84 = vand.u32 %v83, 127
    %vm85 = vcmp.ge.s32.totalorder %v84, 16
    %vm86 = vcmp.ge.s32.totalorder %v84, 0
    %s87 = sld [smem:[#allocation2]]
    %v88 = vstv %s87
    %vm89 = vcmp.lt.s32.totalorder %v84, %v88
    %vm90 = vmand %vm86, %vm89
    %vm91 = vmor %vm85, %vm90
    %vm92 = vcmp.ge.s32.totalorder %v84, 8
    %s93 = sld [smem:[#allocation2 + $0x1]]
    %s94 = sadd.s32 %s93, 8
    %v95 = vstv %s94
    %vm96 = vcmp.lt.s32.totalorder %v84, %v95
    %vm97 = vmand %vm92, %vm96
    %vm98 = vmor %vm91, %vm97
    %vm99 = vcmp.ge.s32.totalorder %v80, 8
    %vm100 = vcmp.ge.s32.totalorder %v81, 8
    %vm101 = vcmp.ge.s32.totalorder %v82, 8
    %v102 = vsel %vm99, 1, 0
    %v103 = vsel %vm100, 1, 0
    %v104 = vsel %vm101, 1, 0
    %vm105 = vcmp.lt.s32.totalorder %v80, 16
    %vm106 = vcmp.lt.s32.totalorder %v81, 16
    %vm107 = vcmp.lt.s32.totalorder %v82, 16
    %v108 = vsub.s32 %v80, 16
    %v109 = vsub.s32 %v81, 16
    %v110 = vsel %vm105, %v102, %v108
    %v111 = vsel %vm106, %v103, %v109
    %v112 = vsel %vm107, %v104, %v80
    %v113 = vsel %vm92, 1, 0
    %vm114 = vcmp.lt.s32.totalorder %v84, 16
    %v115 = vsub.s32 %v84, 16
    %v116 = vsel %vm114, %v113, %v115
    %vm117 = vcmp.eq.s32.totalorder %v110, %v116
    %vm118 = vcmp.eq.s32.totalorder %v111, %v116
    %vm119 = vcmp.eq.s32.totalorder %v112, %v116
    %vm120 = vmand %vm117, %vm98
    %vm121 = vmand %vm118, %vm98
    %vm122 = vmand %vm119, %vm98
    %v123 = vsel %vm120, 0.0, -1e+09
    %v124 = vsel %vm121, 0.0, -1e+09
    %v125 = vsel %vm122, 0.0, -1e+09
    %v126 = vld [vmem:[#allocation7] sm:$0xff]
    %v127 = vld [vmem:[#allocation7 + $0x8] sm:$0xff]
    %v128 = vld [vmem:[#allocation7 + $0x10] sm:$0xff]
    %v129 = vld [vmem:[#allocation7 + $0x18] sm:$0xff]
    %v130 = vld [vmem:[#allocation9] sm:$0x1]
    %v131 = vlaneseq
    %v132 = vshrl.u32 %v131, 7
    %v133 = vsub.s32 0, %v132
    %v134 = vrot.slane %v130, %v133
    %vm135 = vcmask 261120
    %v137 = vsel %vm135, %v77, 0
    %v140 = vsel %vm135, %v78, 0
    %v143 = vsel %vm135, %v76, 0
    %145 = vmatprep.subr.mxu0 0.0
    %146 = vmatpush1.msra.mxu0 0.0
    %147 = vmatprep.subr.mxu0 0.0
    %148 = vmatpush1.msra.mxu0 0.0
    %149 = vmatprep.subr.mxu0 0.0
    %150 = vmatpush1.msra.mxu0 0.0
    %151 = vmatprep.subr.mxu0 0.0
    %152 = vmatpush1.msra.mxu0 0.0
    %153 = vmatprep.subr.mxu0 0.0
    %154 = vmatpush1.msra.mxu0 0.0
    %155 = vmatprep.subr.mxu0 0.0
    %156 = vmatpush1.msra.mxu0 0.0
    %157 = vmatprep.subr.mxu0 0.0
    %158 = vmatpush1.msra.mxu0 0.0
    %159 = vmatprep.subr.mxu0 0.0
    %160 = vmatpush1.msra.mxu0 0.0
    %161 = vmatprep.subr.mxu0 0.0
    %162 = vmatpush1.msra.mxu0 0.0
    %163 = vmatprep.subr.mxu0 0.0
    %164 = vmatpush1.msra.mxu0 0.0
    %165 = vmatprep.subr.mxu0 0.0
    %166 = vmatpush1.msra.mxu0 0.0
    %167 = vmatprep.subr.mxu0 0.0
    %168 = vmatpush1.msra.mxu0 0.0
    %169 = vmatprep.subr.mxu0 0.0
    %170 = vmatpush1.msra.mxu0 %v129
    %171 = vmatprep.subr.mxu0 0.0
    %172 = vmatpush1.msra.mxu0 %v128
    %173 = vmatprep.subr.mxu0 0.0
    %174 = vmatpush1.msra.mxu0 %v127
    %175 = vmatprep.subr.mxu0 0.0
    %176 = vmatpush1.msra.mxu0 %v126
    %177 = vmatprep.subr.mxu0 0.0
    %178 = vmatpush2.msra.mxu0 0.0
    %179 = vmatprep.subr.mxu0 0.0
    %180 = vmatpush2.msra.mxu0 0.0
    %181 = vmatprep.subr.mxu0 0.0
    %182 = vmatpush2.msra.mxu0 0.0
    %183 = vmatprep.subr.mxu0 0.0
    %184 = vmatpush2.msra.mxu0 0.0
    %185 = vmatprep.subr.mxu0 0.0
    %186 = vmatpush2.msra.mxu0 0.0
    %187 = vmatprep.subr.mxu0 0.0
    %188 = vmatpush2.msra.mxu0 0.0
    %189 = vmatprep.subr.mxu0 0.0
    %190 = vmatpush2.msra.mxu0 0.0
    %191 = vmatprep.subr.mxu0 0.0
    %192 = vmatpush2.msra.mxu0 0.0
    %193 = vmatprep.subr.mxu0 0.0
    %194 = vmatpush2.msra.mxu0 0.0
    %195 = vmatprep.subr.mxu0 0.0
    %196 = vmatpush2.msra.mxu0 0.0
    %197 = vmatprep.subr.mxu0 0.0
    %198 = vmatpush2.msra.mxu0 0.0
    %199 = vmatprep.subr.mxu0 0.0
    %200 = vmatpush2.msra.mxu0 0.0
    %201 = vmatprep.subr.mxu0 0.0
    %202 = vmatpush2.msra.mxu0 0.0
    %203 = vmatprep.subr.mxu0 0.0
    %204 = vmatpush2.msra.mxu0 0.0
    %205 = vmatprep.subr.mxu0 0.0
    %206 = vmatpush2.msra.mxu0 0.0
    %207 = vmatprep.subr.mxu0 0.0
    %208 = vmatpush2.msra.mxu0 0.0
    %209 = vmatprep.mubr.f32.mxu0 0.0
    %210 = vmatmul.mubr.f32.gmra.mxu0 %v137
    %v211 = vpop.f32.mrf.mxu0
    %v212 = vadd.f32 %v134, %v211
    %v213 = vpop.f32.mrf.mxu0
    %214 = vmatprep.mubr.f32.mxu0 0.0
    %215 = vmatmul.mubr.f32.gmra.mxu0 %v140
    %v216 = vpop.f32.mrf.mxu0
    %v217 = vadd.f32 %v134, %v216
    %v218 = vpop.f32.mrf.mxu0
    %219 = vmatprep.mubr.f32.mxu0 0.0
    %220 = vmatmul.mubr.f32.gmra.mxu0 %v143
    %v221 = vpop.f32.mrf.mxu0
    %v222 = vadd.f32 %v134, %v221
    %v223 = vpop.f32.mrf.mxu0
    %224 = vdwg.mxu0
    %228 = vrot.lane.b32.xlu0 %v212, 120
    %v229 = vpop.permute.xlu0 %228
    %230 = vrot.lane.b32.xlu0 %v217, 120
    %v231 = vpop.permute.xlu0 %230
    %232 = vrot.lane.b32.xlu0 %v222, 120
    %v233 = vpop.permute.xlu0 %232
    %234 = vrot.lane.b32.xlu0 %v212, 112
    %v235 = vpop.permute.xlu0 %234
    %236 = vrot.lane.b32.xlu0 %v217, 112
    %v237 = vpop.permute.xlu0 %236
    %238 = vrot.lane.b32.xlu0 %v222, 112
    %v239 = vpop.permute.xlu0 %238
    %240 = vrot.lane.b32.xlu0 %v212, 104
    %v241 = vpop.permute.xlu0 %240
    %242 = vrot.lane.b32.xlu0 %v217, 104
    %v243 = vpop.permute.xlu0 %242
    %244 = vrot.lane.b32.xlu0 %v222, 104
    %v245 = vpop.permute.xlu0 %244
    %246 = vrot.lane.b32.xlu0 %v212, 96
    %v247 = vpop.permute.xlu0 %246
    %248 = vrot.lane.b32.xlu0 %v217, 96
    %v249 = vpop.permute.xlu0 %248
    %250 = vrot.lane.b32.xlu0 %v222, 96
    %v251 = vpop.permute.xlu0 %250
    %vm252 = vcmask 64512
    %v253 = vsel %vm252, %v212, 0
    %v255 = vsel %vm252, %v217, 0
    %v257 = vsel %vm252, %v222, 0
    %v259 = vsel %vm252, %v247, 0
    %v261 = vsel %vm252, %v249, 0
    %v263 = vsel %vm252, %v251, 0
    %265 = vmatprep.subr.mxu0 0.0
    %266 = vmatpush1.xpose.msra.mxu0 0.0
    %267 = vmatprep.subr.mxu0 0.0
    %268 = vmatpush1.xpose.msra.mxu0 0.0
    %269 = vmatprep.subr.mxu0 0.0
    %270 = vmatpush1.xpose.msra.mxu0 0.0
    %271 = vmatprep.subr.mxu0 0.0
    %272 = vmatpush1.xpose.msra.mxu0 0.0
    %273 = vmatprep.subr.mxu0 0.0
    %274 = vmatpush1.xpose.msra.mxu0 0.0
    %275 = vmatprep.subr.mxu0 0.0
    %276 = vmatpush1.xpose.msra.mxu0 0.0
    %277 = vmatprep.subr.mxu0 0.0
    %278 = vmatpush1.xpose.msra.mxu0 0.0
    %279 = vmatprep.subr.mxu0 0.0
    %280 = vmatpush1.xpose.msra.mxu0 0.0
    %281 = vmatprep.subr.mxu0 0.0
    %282 = vmatpush1.xpose.msra.mxu0 0.0
    %283 = vmatprep.subr.mxu0 0.0
    %284 = vmatpush1.xpose.msra.mxu0 0.0
    %285 = vmatprep.subr.mxu0 0.0
    %286 = vmatpush1.xpose.msra.mxu0 0.0
    %287 = vmatprep.subr.mxu0 0.0
    %288 = vmatpush1.xpose.msra.mxu0 0.0
    %289 = vmatprep.subr.mxu0 0.0
    %290 = vmatpush1.xpose.msra.mxu0 0.0
    %291 = vmatprep.subr.mxu0 0.0
    %292 = vmatpush1.xpose.msra.mxu0 %v263
    %293 = vmatprep.subr.mxu0 0.0
    %294 = vmatpush1.xpose.msra.mxu0 %v261
    %295 = vmatprep.subr.mxu0 0.0
    %296 = vmatpush1.xpose.msra.mxu0 %v259
    %297 = vmatprep.subr.mxu0 0.0
    %298 = vmatpush2.xpose.msra.mxu0 0.0
    %299 = vmatprep.subr.mxu0 0.0
    %300 = vmatpush2.xpose.msra.mxu0 0.0
    %301 = vmatprep.subr.mxu0 0.0
    %302 = vmatpush2.xpose.msra.mxu0 0.0
    %303 = vmatprep.subr.mxu0 0.0
    %304 = vmatpush2.xpose.msra.mxu0 0.0
    %305 = vmatprep.subr.mxu0 0.0
    %306 = vmatpush2.xpose.msra.mxu0 0.0
    %307 = vmatprep.subr.mxu0 0.0
    %308 = vmatpush2.xpose.msra.mxu0 0.0
    %309 = vmatprep.subr.mxu0 0.0
    %310 = vmatpush2.xpose.msra.mxu0 0.0
    %311 = vmatprep.subr.mxu0 0.0
    %312 = vmatpush2.xpose.msra.mxu0 0.0
    %313 = vmatprep.subr.mxu0 0.0
    %314 = vmatpush2.xpose.msra.mxu0 0.0
    %315 = vmatprep.subr.mxu0 0.0
    %316 = vmatpush2.xpose.msra.mxu0 0.0
    %317 = vmatprep.subr.mxu0 0.0
    %318 = vmatpush2.xpose.msra.mxu0 0.0
    %319 = vmatprep.subr.mxu0 0.0
    %320 = vmatpush2.xpose.msra.mxu0 0.0
    %321 = vmatprep.subr.mxu0 0.0
    %322 = vmatpush2.xpose.msra.mxu0 0.0
    %323 = vmatprep.subr.mxu0 0.0
    %324 = vmatpush2.xpose.msra.mxu0 0.0
    %325 = vmatprep.subr.mxu0 0.0
    %326 = vmatpush2.xpose.msra.mxu0 0.0
    %327 = vmatprep.subr.mxu0 0.0
    %328 = vmatpush2.xpose.msra.mxu0 0.0
    %329 = vmatprep.mubr.f32.mxu0 0.0
    %330 = vmatmul.mubr.f32.gmra.mxu0 %v253
    %v331 = vpop.f32.mrf.mxu0
    %v332 = vadd.f32 0.0, %v331
    %v333 = vpop.f32.mrf.mxu0
    %334 = vmatprep.mubr.f32.mxu0 0.0
    %335 = vmatmul.mubr.f32.gmra.mxu0 %v255
    %v336 = vpop.f32.mrf.mxu0
    %v337 = vadd.f32 0.0, %v336
    %v338 = vpop.f32.mrf.mxu0
    %339 = vmatprep.mubr.f32.mxu0 0.0
    %340 = vmatmul.mubr.f32.gmra.mxu0 %v257
    %v341 = vpop.f32.mrf.mxu0
    %v342 = vadd.f32 0.0, %v341
    %v343 = vpop.f32.mrf.mxu0
    %344 = vdwg.mxu0
    %345 = vrot.lane.b32.xlu0 %v229, 96
    %v346 = vpop.permute.xlu0 %345
    %347 = vrot.lane.b32.xlu0 %v231, 96
    %v348 = vpop.permute.xlu0 %347
    %349 = vrot.lane.b32.xlu0 %v233, 96
    %v350 = vpop.permute.xlu0 %349
    %v351 = vsel %vm252, %v229, 0
    %v353 = vsel %vm252, %v231, 0
    %v355 = vsel %vm252, %v233, 0
    %v357 = vsel %vm252, %v346, 0
    %v359 = vsel %vm252, %v348, 0
    %v361 = vsel %vm252, %v350, 0
    %363 = vmatprep.subr.mxu0 0.0
    %364 = vmatpush1.xpose.msra.mxu0 0.0
    %365 = vmatprep.subr.mxu0 0.0
    %366 = vmatpush1.xpose.msra.mxu0 0.0
    %367 = vmatprep.subr.mxu0 0.0
    %368 = vmatpush1.xpose.msra.mxu0 0.0
    %369 = vmatprep.subr.mxu0 0.0
    %370 = vmatpush1.xpose.msra.mxu0 0.0
    %371 = vmatprep.subr.mxu0 0.0
    %372 = vmatpush1.xpose.msra.mxu0 0.0
    %373 = vmatprep.subr.mxu0 0.0
    %374 = vmatpush1.xpose.msra.mxu0 0.0
    %375 = vmatprep.subr.mxu0 0.0
    %376 = vmatpush1.xpose.msra.mxu0 0.0
    %377 = vmatprep.subr.mxu0 0.0
    %378 = vmatpush1.xpose.msra.mxu0 0.0
    %379 = vmatprep.subr.mxu0 0.0
    %380 = vmatpush1.xpose.msra.mxu0 0.0
    %381 = vmatprep.subr.mxu0 0.0
    %382 = vmatpush1.xpose.msra.mxu0 0.0
    %383 = vmatprep.subr.mxu0 0.0
    %384 = vmatpush1.xpose.msra.mxu0 0.0
    %385 = vmatprep.subr.mxu0 0.0
    %386 = vmatpush1.xpose.msra.mxu0 0.0
    %387 = vmatprep.subr.mxu0 0.0
    %388 = vmatpush1.xpose.msra.mxu0 0.0
    %389 = vmatprep.subr.mxu0 0.0
    %390 = vmatpush1.xpose.msra.mxu0 %v361
    %391 = vmatprep.subr.mxu0 0.0
    %392 = vmatpush1.xpose.msra.mxu0 %v359
    %393 = vmatprep.subr.mxu0 0.0
    %394 = vmatpush1.xpose.msra.mxu0 %v357
    %395 = vmatprep.subr.mxu0 0.0
    %396 = vmatpush2.xpose.msra.mxu0 0.0
    %397 = vmatprep.subr.mxu0 0.0
    %398 = vmatpush2.xpose.msra.mxu0 0.0
    %399 = vmatprep.subr.mxu0 0.0
    %400 = vmatpush2.xpose.msra.mxu0 0.0
    %401 = vmatprep.subr.mxu0 0.0
    %402 = vmatpush2.xpose.msra.mxu0 0.0
    %403 = vmatprep.subr.mxu0 0.0
    %404 = vmatpush2.xpose.msra.mxu0 0.0
    %405 = vmatprep.subr.mxu0 0.0
    %406 = vmatpush2.xpose.msra.mxu0 0.0
    %407 = vmatprep.subr.mxu0 0.0
    %408 = vmatpush2.xpose.msra.mxu0 0.0
    %409 = vmatprep.subr.mxu0 0.0
    %410 = vmatpush2.xpose.msra.mxu0 0.0
    %411 = vmatprep.subr.mxu0 0.0
    %412 = vmatpush2.xpose.msra.mxu0 0.0
    %413 = vmatprep.subr.mxu0 0.0
    %414 = vmatpush2.xpose.msra.mxu0 0.0
    %415 = vmatprep.subr.mxu0 0.0
    %416 = vmatpush2.xpose.msra.mxu0 0.0
    %417 = vmatprep.subr.mxu0 0.0
    %418 = vmatpush2.xpose.msra.mxu0 0.0
    %419 = vmatprep.subr.mxu0 0.0
    %420 = vmatpush2.xpose.msra.mxu0 0.0
    %421 = vmatprep.subr.mxu0 0.0
    %422 = vmatpush2.xpose.msra.mxu0 0.0
    %423 = vmatprep.subr.mxu0 0.0
    %424 = vmatpush2.xpose.msra.mxu0 0.0
    %425 = vmatprep.subr.mxu0 0.0
    %426 = vmatpush2.xpose.msra.mxu0 0.0
    %427 = vmatprep.mubr.f32.mxu0 0.0
    %428 = vmatmul.mubr.f32.gmra.mxu0 %v351
    %v429 = vpop.f32.mrf.mxu0
    %v430 = vadd.f32 0.0, %v429
    %v431 = vpop.f32.mrf.mxu0
    %432 = vmatprep.mubr.f32.mxu0 0.0
    %433 = vmatmul.mubr.f32.gmra.mxu0 %v353
    %v434 = vpop.f32.mrf.mxu0
    %v435 = vadd.f32 0.0, %v434
    %v436 = vpop.f32.mrf.mxu0
    %437 = vmatprep.mubr.f32.mxu0 0.0
    %438 = vmatmul.mubr.f32.gmra.mxu0 %v355
    %v439 = vpop.f32.mrf.mxu0
    %v440 = vadd.f32 0.0, %v439
    %v441 = vpop.f32.mrf.mxu0
    %442 = vdwg.mxu0
    %443 = vrot.lane.b32.xlu0 %v235, 96
    %v444 = vpop.permute.xlu0 %443
    %445 = vrot.lane.b32.xlu0 %v237, 96
    %v446 = vpop.permute.xlu0 %445
    %447 = vrot.lane.b32.xlu0 %v239, 96
    %v448 = vpop.permute.xlu0 %447
    %v449 = vsel %vm252, %v235, 0
    %v451 = vsel %vm252, %v237, 0
    %v453 = vsel %vm252, %v239, 0
    %v455 = vsel %vm252, %v444, 0
    %v457 = vsel %vm252, %v446, 0
    %v459 = vsel %vm252, %v448, 0
    %461 = vmatprep.subr.mxu0 0.0
    %462 = vmatpush1.xpose.msra.mxu0 0.0
    %463 = vmatprep.subr.mxu0 0.0
    %464 = vmatpush1.xpose.msra.mxu0 0.0
    %465 = vmatprep.subr.mxu0 0.0
    %466 = vmatpush1.xpose.msra.mxu0 0.0
    %467 = vmatprep.subr.mxu0 0.0
    %468 = vmatpush1.xpose.msra.mxu0 0.0
    %469 = vmatprep.subr.mxu0 0.0
    %470 = vmatpush1.xpose.msra.mxu0 0.0
    %471 = vmatprep.subr.mxu0 0.0
    %472 = vmatpush1.xpose.msra.mxu0 0.0
    %473 = vmatprep.subr.mxu0 0.0
    %474 = vmatpush1.xpose.msra.mxu0 0.0
    %475 = vmatprep.subr.mxu0 0.0
    %476 = vmatpush1.xpose.msra.mxu0 0.0
    %477 = vmatprep.subr.mxu0 0.0
    %478 = vmatpush1.xpose.msra.mxu0 0.0
    %479 = vmatprep.subr.mxu0 0.0
    %480 = vmatpush1.xpose.msra.mxu0 0.0
    %481 = vmatprep.subr.mxu0 0.0
    %482 = vmatpush1.xpose.msra.mxu0 0.0
    %483 = vmatprep.subr.mxu0 0.0
    %484 = vmatpush1.xpose.msra.mxu0 0.0
    %485 = vmatprep.subr.mxu0 0.0
    %486 = vmatpush1.xpose.msra.mxu0 0.0
    %487 = vmatprep.subr.mxu0 0.0
    %488 = vmatpush1.xpose.msra.mxu0 %v459
    %489 = vmatprep.subr.mxu0 0.0
    %490 = vmatpush1.xpose.msra.mxu0 %v457
    %491 = vmatprep.subr.mxu0 0.0
    %492 = vmatpush1.xpose.msra.mxu0 %v455
    %493 = vmatprep.subr.mxu0 0.0
    %494 = vmatpush2.xpose.msra.mxu0 0.0
    %495 = vmatprep.subr.mxu0 0.0
    %496 = vmatpush2.xpose.msra.mxu0 0.0
    %497 = vmatprep.subr.mxu0 0.0
    %498 = vmatpush2.xpose.msra.mxu0 0.0
    %499 = vmatprep.subr.mxu0 0.0
    %500 = vmatpush2.xpose.msra.mxu0 0.0
    %501 = vmatprep.subr.mxu0 0.0
    %502 = vmatpush2.xpose.msra.mxu0 0.0
    %503 = vmatprep.subr.mxu0 0.0
    %504 = vmatpush2.xpose.msra.mxu0 0.0
    %505 = vmatprep.subr.mxu0 0.0
    %506 = vmatpush2.xpose.msra.mxu0 0.0
    %507 = vmatprep.subr.mxu0 0.0
    %508 = vmatpush2.xpose.msra.mxu0 0.0
    %509 = vmatprep.subr.mxu0 0.0
    %510 = vmatpush2.xpose.msra.mxu0 0.0
    %511 = vmatprep.subr.mxu0 0.0
    %512 = vmatpush2.xpose.msra.mxu0 0.0
    %513 = vmatprep.subr.mxu0 0.0
    %514 = vmatpush2.xpose.msra.mxu0 0.0
    %515 = vmatprep.subr.mxu0 0.0
    %516 = vmatpush2.xpose.msra.mxu0 0.0
    %517 = vmatprep.subr.mxu0 0.0
    %518 = vmatpush2.xpose.msra.mxu0 0.0
    %519 = vmatprep.subr.mxu0 0.0
    %520 = vmatpush2.xpose.msra.mxu0 0.0
    %521 = vmatprep.subr.mxu0 0.0
    %522 = vmatpush2.xpose.msra.mxu0 0.0
    %523 = vmatprep.subr.mxu0 0.0
    %524 = vmatpush2.xpose.msra.mxu0 0.0
    %525 = vmatprep.mubr.f32.mxu0 0.0
    %526 = vmatmul.mubr.f32.gmra.mxu0 %v449
    %v527 = vpop.f32.mrf.mxu0
    %v528 = vadd.f32 0.0, %v527
    %v529 = vpop.f32.mrf.mxu0
    %530 = vmatprep.mubr.f32.mxu0 0.0
    %531 = vmatmul.mubr.f32.gmra.mxu0 %v451
    %v532 = vpop.f32.mrf.mxu0
    %v533 = vadd.f32 0.0, %v532
    %v534 = vpop.f32.mrf.mxu0
    %535 = vmatprep.mubr.f32.mxu0 0.0
    %536 = vmatmul.mubr.f32.gmra.mxu0 %v453
    %v537 = vpop.f32.mrf.mxu0
    %v538 = vadd.f32 0.0, %v537
    %v539 = vpop.f32.mrf.mxu0
    %540 = vdwg.mxu0
    %541 = vrot.lane.b32.xlu0 %v241, 96
    %v542 = vpop.permute.xlu0 %541
    %543 = vrot.lane.b32.xlu0 %v243, 96
    %v544 = vpop.permute.xlu0 %543
    %545 = vrot.lane.b32.xlu0 %v245, 96
    %v546 = vpop.permute.xlu0 %545
    %v547 = vsel %vm252, %v241, 0
    %v549 = vsel %vm252, %v243, 0
    %v551 = vsel %vm252, %v245, 0
    %v553 = vsel %vm252, %v542, 0
    %v555 = vsel %vm252, %v544, 0
    %v557 = vsel %vm252, %v546, 0
    %559 = vmatprep.subr.mxu0 0.0
    %560 = vmatpush1.xpose.msra.mxu0 0.0
    %561 = vmatprep.subr.mxu0 0.0
    %562 = vmatpush1.xpose.msra.mxu0 0.0
    %563 = vmatprep.subr.mxu0 0.0
    %564 = vmatpush1.xpose.msra.mxu0 0.0
    %565 = vmatprep.subr.mxu0 0.0
    %566 = vmatpush1.xpose.msra.mxu0 0.0
    %567 = vmatprep.subr.mxu0 0.0
    %568 = vmatpush1.xpose.msra.mxu0 0.0
    %569 = vmatprep.subr.mxu0 0.0
    %570 = vmatpush1.xpose.msra.mxu0 0.0
    %571 = vmatprep.subr.mxu0 0.0
    %572 = vmatpush1.xpose.msra.mxu0 0.0
    %573 = vmatprep.subr.mxu0 0.0
    %574 = vmatpush1.xpose.msra.mxu0 0.0
    %575 = vmatprep.subr.mxu0 0.0
    %576 = vmatpush1.xpose.msra.mxu0 0.0
    %577 = vmatprep.subr.mxu0 0.0
    %578 = vmatpush1.xpose.msra.mxu0 0.0
    %579 = vmatprep.subr.mxu0 0.0
    %580 = vmatpush1.xpose.msra.mxu0 0.0
    %581 = vmatprep.subr.mxu0 0.0
    %582 = vmatpush1.xpose.msra.mxu0 0.0
    %583 = vmatprep.subr.mxu0 0.0
    %584 = vmatpush1.xpose.msra.mxu0 0.0
    %585 = vmatprep.subr.mxu0 0.0
    %586 = vmatpush1.xpose.msra.mxu0 %v557
    %587 = vmatprep.subr.mxu0 0.0
    %588 = vmatpush1.xpose.msra.mxu0 %v555
    %589 = vmatprep.subr.mxu0 0.0
    %590 = vmatpush1.xpose.msra.mxu0 %v553
    %591 = vmatprep.subr.mxu0 0.0
    %592 = vmatpush2.xpose.msra.mxu0 0.0
    %593 = vmatprep.subr.mxu0 0.0
    %594 = vmatpush2.xpose.msra.mxu0 0.0
    %595 = vmatprep.subr.mxu0 0.0
    %596 = vmatpush2.xpose.msra.mxu0 0.0
    %597 = vmatprep.subr.mxu0 0.0
    %598 = vmatpush2.xpose.msra.mxu0 0.0
    %599 = vmatprep.subr.mxu0 0.0
    %600 = vmatpush2.xpose.msra.mxu0 0.0
    %601 = vmatprep.subr.mxu0 0.0
    %602 = vmatpush2.xpose.msra.mxu0 0.0
    %603 = vmatprep.subr.mxu0 0.0
    %604 = vmatpush2.xpose.msra.mxu0 0.0
    %605 = vmatprep.subr.mxu0 0.0
    %606 = vmatpush2.xpose.msra.mxu0 0.0
    %607 = vmatprep.subr.mxu0 0.0
    %608 = vmatpush2.xpose.msra.mxu0 0.0
    %609 = vmatprep.subr.mxu0 0.0
    %610 = vmatpush2.xpose.msra.mxu0 0.0
    %611 = vmatprep.subr.mxu0 0.0
    %612 = vmatpush2.xpose.msra.mxu0 0.0
    %613 = vmatprep.subr.mxu0 0.0
    %614 = vmatpush2.xpose.msra.mxu0 0.0
    %615 = vmatprep.subr.mxu0 0.0
    %616 = vmatpush2.xpose.msra.mxu0 0.0
    %617 = vmatprep.subr.mxu0 0.0
    %618 = vmatpush2.xpose.msra.mxu0 0.0
    %619 = vmatprep.subr.mxu0 0.0
    %620 = vmatpush2.xpose.msra.mxu0 0.0
    %621 = vmatprep.subr.mxu0 0.0
    %622 = vmatpush2.xpose.msra.mxu0 0.0
    %623 = vmatprep.mubr.f32.mxu0 0.0
    %624 = vmatmul.mubr.f32.gmra.mxu0 %v547
    %v625 = vpop.f32.mrf.mxu0
    %v626 = vadd.f32 0.0, %v625
    %v627 = vpop.f32.mrf.mxu0
    %628 = vmatprep.mubr.f32.mxu0 0.0
    %629 = vmatmul.mubr.f32.gmra.mxu0 %v549
    %v630 = vpop.f32.mrf.mxu0
    %v631 = vadd.f32 0.0, %v630
    %v632 = vpop.f32.mrf.mxu0
    %633 = vmatprep.mubr.f32.mxu0 0.0
    %634 = vmatmul.mubr.f32.gmra.mxu0 %v551
    %v635 = vpop.f32.mrf.mxu0
    %v636 = vadd.f32 0.0, %v635
    %v637 = vpop.f32.mrf.mxu0
    %638 = vdwg.mxu0
    %v639 = vmul.f32 %v332, 0.35355338
    %v640 = vmul.f32 %v337, 0.35355338
    %v641 = vmul.f32 %v342, 0.35355338
    %v642 = vmul.f32 %v430, 0.35355338
    %v643 = vmul.f32 %v435, 0.35355338
    %v644 = vmul.f32 %v440, 0.35355338
    %v645 = vmul.f32 %v528, 0.35355338
    %v646 = vmul.f32 %v533, 0.35355338
    %v647 = vmul.f32 %v538, 0.35355338
    %v648 = vmul.f32 %v626, 0.35355338
    %v649 = vmul.f32 %v631, 0.35355338
    %v650 = vmul.f32 %v636, 0.35355338
    %v651 = vadd.f32 %v639, %v123
    %v652 = vadd.f32 %v640, %v124
    %v653 = vadd.f32 %v641, %v125
    %v654 = vadd.f32 %v642, %v123
    %v655 = vadd.f32 %v643, %v124
    %v656 = vadd.f32 %v644, %v125
    %v657 = vadd.f32 %v645, %v123
    %v658 = vadd.f32 %v646, %v124
    %v659 = vadd.f32 %v647, %v125
    %v660 = vadd.f32 %v648, %v123
    %v661 = vadd.f32 %v649, %v124
    %v662 = vadd.f32 %v650, %v125
    %vm663 = vcmask 146432
    %v664 = vsel %vm663, %v651, -inf
    %665 = vmax.xlane.f32.xlu0 %v664
    %v666 = vpop.xlane.xlu0 %665
    %v667 = vsel %vm663, %v652, -inf
    %668 = vmax.xlane.f32.xlu0 %v667
    %v669 = vpop.xlane.xlu0 %668
    %vm670 = vcmask 140288
    %v671 = vsel %vm670, %v653, -inf
    %672 = vmax.xlane.f32.xlu0 %v671
    %v673 = vpop.xlane.xlu0 %672
    %v674 = vsel %vm663, %v654, -inf
    %675 = vmax.xlane.f32.xlu0 %v674
    %v676 = vpop.xlane.xlu0 %675
    %v677 = vsel %vm663, %v655, -inf
    %678 = vmax.xlane.f32.xlu0 %v677
    %v679 = vpop.xlane.xlu0 %678
    %v680 = vsel %vm670, %v656, -inf
    %681 = vmax.xlane.f32.xlu0 %v680
    %v682 = vpop.xlane.xlu0 %681
    %v683 = vsel %vm663, %v657, -inf
    %684 = vmax.xlane.f32.xlu0 %v683
    %v685 = vpop.xlane.xlu0 %684
    %v686 = vsel %vm663, %v658, -inf
    %687 = vmax.xlane.f32.xlu0 %v686
    %v688 = vpop.xlane.xlu0 %687
    %v689 = vsel %vm670, %v659, -inf
    %690 = vmax.xlane.f32.xlu0 %v689
    %v691 = vpop.xlane.xlu0 %690
    %v692 = vsel %vm663, %v660, -inf
    %693 = vmax.xlane.f32.xlu0 %v692
    %v694 = vpop.xlane.xlu0 %693
    %v695 = vsel %vm663, %v661, -inf
    %696 = vmax.xlane.f32.xlu0 %v695
    %v697 = vpop.xlane.xlu0 %696
    %v698 = vsel %vm670, %v662, -inf
    %699 = vmax.xlane.f32.xlu0 %v698
    %v700 = vpop.xlane.xlu0 %699
    %v701 = vsub.f32 %v651, %v666
    %v702 = vsub.f32 %v652, %v669
    %v703 = vsub.f32 %v653, %v673
    %v704 = vsub.f32 %v654, %v676
    %v705 = vsub.f32 %v655, %v679
    %v706 = vsub.f32 %v656, %v682
    %v707 = vsub.f32 %v657, %v685
    %v708 = vsub.f32 %v658, %v688
    %v709 = vsub.f32 %v659, %v691
    %v710 = vsub.f32 %v660, %v694
    %v711 = vsub.f32 %v661, %v697
    %v712 = vsub.f32 %v662, %v700
    %v713 = vmul.f32 %v701, 1.442695
    %v714 = vpow.pop %v713
    %v715 = vmul.f32 %v702, 1.442695
    %v716 = vpow.pop %v715
    %v717 = vmul.f32 %v703, 1.442695
    %v718 = vpow.pop %v717
    %v719 = vmul.f32 %v704, 1.442695
    %v720 = vpow.pop %v719
    %v721 = vmul.f32 %v705, 1.442695
    %v722 = vpow.pop %v721
    %v723 = vmul.f32 %v706, 1.442695
    %v724 = vpow.pop %v723
    %v725 = vmul.f32 %v707, 1.442695
    %v726 = vpow.pop %v725
    %v727 = vmul.f32 %v708, 1.442695
    %v728 = vpow.pop %v727
    %v729 = vmul.f32 %v709, 1.442695
    %v730 = vpow.pop %v729
    %v731 = vmul.f32 %v710, 1.442695
    %v732 = vpow.pop %v731
    %v733 = vmul.f32 %v711, 1.442695
    %v734 = vpow.pop %v733
    %v735 = vmul.f32 %v712, 1.442695
    %v736 = vpow.pop %v735
    %v737 = vsel %vm663, %v714, 0.0
    %738 = vadd.xlane.f32.xlu0 %v737
    %v739 = vpop.xlane.xlu0 %738
    %v740 = vsel %vm663, %v716, 0.0
    %741 = vadd.xlane.f32.xlu0 %v740
    %v742 = vpop.xlane.xlu0 %741
    %v743 = vsel %vm670, %v718, 0.0
    %744 = vadd.xlane.f32.xlu0 %v743
    %v745 = vpop.xlane.xlu0 %744
    %v746 = vsel %vm663, %v720, 0.0
    %747 = vadd.xlane.f32.xlu0 %v746
    %v748 = vpop.xlane.xlu0 %747
    %v749 = vsel %vm663, %v722, 0.0
    %750 = vadd.xlane.f32.xlu0 %v749
    %v751 = vpop.xlane.xlu0 %750
    %v752 = vsel %vm670, %v724, 0.0
    %753 = vadd.xlane.f32.xlu0 %v752
    %v754 = vpop.xlane.xlu0 %753
    %v755 = vsel %vm663, %v726, 0.0
    %756 = vadd.xlane.f32.xlu0 %v755
    %v757 = vpop.xlane.xlu0 %756
    %v758 = vsel %vm663, %v728, 0.0
    %759 = vadd.xlane.f32.xlu0 %v758
    %v760 = vpop.xlane.xlu0 %759
    %v761 = vsel %vm670, %v730, 0.0
    %762 = vadd.xlane.f32.xlu0 %v761
    %v763 = vpop.xlane.xlu0 %762
    %v764 = vsel %vm663, %v732, 0.0
    %765 = vadd.xlane.f32.xlu0 %v764
    %v766 = vpop.xlane.xlu0 %765
    %v767 = vsel %vm663, %v734, 0.0
    %768 = vadd.xlane.f32.xlu0 %v767
    %v769 = vpop.xlane.xlu0 %768
    %v770 = vsel %vm670, %v736, 0.0
    %771 = vadd.xlane.f32.xlu0 %v770
    %v772 = vpop.xlane.xlu0 %771
    %v773 = vrcp.pop %v739
    %v774 = vrcp.pop %v742
    %v775 = vrcp.pop %v745
    %v776 = vrcp.pop %v748
    %v777 = vrcp.pop %v751
    %v778 = vrcp.pop %v754
    %v779 = vrcp.pop %v757
    %v780 = vrcp.pop %v760
    %v781 = vrcp.pop %v763
    %v782 = vrcp.pop %v766
    %v783 = vrcp.pop %v769
    %v784 = vrcp.pop %v772
    %v785 = vmul.f32 %v714, %v773
    %v786 = vmul.f32 %v716, %v774
    %v787 = vmul.f32 %v718, %v775
    %v788 = vmul.f32 %v720, %v776
    %v789 = vmul.f32 %v722, %v777
    %v790 = vmul.f32 %v724, %v778
    %v791 = vmul.f32 %v726, %v779
    %v792 = vmul.f32 %v728, %v780
    %v793 = vmul.f32 %v730, %v781
    %v794 = vmul.f32 %v732, %v782
    %v795 = vmul.f32 %v734, %v783
    %v796 = vmul.f32 %v736, %v784
    %797 = vrot.lane.b32.xlu0 %v212, 64
    %v798 = vpop.permute.xlu0 %797
    %799 = vrot.lane.b32.xlu0 %v217, 64
    %v800 = vpop.permute.xlu0 %799
    %801 = vrot.lane.b32.xlu0 %v222, 64
    %v802 = vpop.permute.xlu0 %801
    %v806 = vsel %vm663, %v785, 0
    %v809 = vsel %vm663, %v786, 0
    %v812 = vsel %vm663, %v787, 0
    %vm814 = vcmask 1041408
    %v815 = vsel %vm814, %v802, 0
    %817 = vmatprep.subr.mxu0 0.0
    %818 = vmatpush1.msra.mxu0 0.0
    %819 = vmatprep.subr.mxu0 0.0
    %820 = vmatpush1.msra.mxu0 0.0
    %821 = vmatprep.subr.mxu0 0.0
    %822 = vmatpush1.msra.mxu0 0.0
    %823 = vmatprep.subr.mxu0 0.0
    %824 = vmatpush1.msra.mxu0 0.0
    %825 = vmatprep.subr.mxu0 0.0
    %826 = vmatpush1.msra.mxu0 0.0
    %827 = vmatprep.subr.mxu0 0.0
    %828 = vmatpush1.msra.mxu0 0.0
    %829 = vmatprep.subr.mxu0 0.0
    %830 = vmatpush1.msra.mxu0 0.0
    %831 = vmatprep.subr.mxu0 0.0
    %832 = vmatpush1.msra.mxu0 0.0
    %833 = vmatprep.subr.mxu0 0.0
    %834 = vmatpush1.msra.mxu0 0.0
    %835 = vmatprep.subr.mxu0 0.0
    %836 = vmatpush1.msra.mxu0 0.0
    %837 = vmatprep.subr.mxu0 0.0
    %838 = vmatpush1.msra.mxu0 0.0
    %839 = vmatprep.subr.mxu0 0.0
    %840 = vmatpush1.msra.mxu0 0.0
    %841 = vmatprep.subr.mxu0 0.0
    %842 = vmatpush1.msra.mxu0 0.0
    %843 = vmatprep.subr.mxu0 0.0
    %844 = vmatpush1.msra.mxu0 %v815
    %845 = vmatprep.subr.mxu0 0.0
    %846 = vmatpush1.msra.mxu0 %v800
    %847 = vmatprep.subr.mxu0 0.0
    %848 = vmatpush1.msra.mxu0 %v798
    %849 = vmatprep.subr.mxu0 0.0
    %850 = vmatpush2.msra.mxu0 0.0
    %851 = vmatprep.subr.mxu0 0.0
    %852 = vmatpush2.msra.mxu0 0.0
    %853 = vmatprep.subr.mxu0 0.0
    %854 = vmatpush2.msra.mxu0 0.0
    %855 = vmatprep.subr.mxu0 0.0
    %856 = vmatpush2.msra.mxu0 0.0
    %857 = vmatprep.subr.mxu0 0.0
    %858 = vmatpush2.msra.mxu0 0.0
    %859 = vmatprep.subr.mxu0 0.0
    %860 = vmatpush2.msra.mxu0 0.0
    %861 = vmatprep.subr.mxu0 0.0
    %862 = vmatpush2.msra.mxu0 0.0
    %863 = vmatprep.subr.mxu0 0.0
    %864 = vmatpush2.msra.mxu0 0.0
    %865 = vmatprep.subr.mxu0 0.0
    %866 = vmatpush2.msra.mxu0 0.0
    %867 = vmatprep.subr.mxu0 0.0
    %868 = vmatpush2.msra.mxu0 0.0
    %869 = vmatprep.subr.mxu0 0.0
    %870 = vmatpush2.msra.mxu0 0.0
    %871 = vmatprep.subr.mxu0 0.0
    %872 = vmatpush2.msra.mxu0 0.0
    %873 = vmatprep.subr.mxu0 0.0
    %874 = vmatpush2.msra.mxu0 0.0
    %875 = vmatprep.subr.mxu0 0.0
    %876 = vmatpush2.msra.mxu0 0.0
    %877 = vmatprep.subr.mxu0 0.0
    %878 = vmatpush2.msra.mxu0 0.0
    %879 = vmatprep.subr.mxu0 0.0
    %880 = vmatpush2.msra.mxu0 0.0
    %881 = vmatprep.mubr.f32.mxu0 0.0
    %882 = vmatmul.mubr.f32.gmra.mxu0 %v806
    %v883 = vpop.f32.mrf.mxu0
    %v884 = vadd.f32 0.0, %v883
    %v885 = vpop.f32.mrf.mxu0
    %886 = vmatprep.mubr.f32.mxu0 0.0
    %887 = vmatmul.mubr.f32.gmra.mxu0 %v809
    %v888 = vpop.f32.mrf.mxu0
    %v889 = vadd.f32 0.0, %v888
    %v890 = vpop.f32.mrf.mxu0
    %891 = vmatprep.mubr.f32.mxu0 0.0
    %892 = vmatmul.mubr.f32.gmra.mxu0 %v812
    %v893 = vpop.f32.mrf.mxu0
    %v894 = vadd.f32 0.0, %v893
    %v895 = vpop.f32.mrf.mxu0
    %896 = vdwg.mxu0
    %897 = vrot.lane.b32.xlu0 %v229, 64
    %v898 = vpop.permute.xlu0 %897
    %899 = vrot.lane.b32.xlu0 %v231, 64
    %v900 = vpop.permute.xlu0 %899
    %901 = vrot.lane.b32.xlu0 %v233, 64
    %v902 = vpop.permute.xlu0 %901
    %v906 = vsel %vm663, %v788, 0
    %v909 = vsel %vm663, %v789, 0
    %v912 = vsel %vm663, %v790, 0
    %v914 = vsel %vm814, %v902, 0
    %916 = vmatprep.subr.mxu0 0.0
    %917 = vmatpush1.msra.mxu0 0.0
    %918 = vmatprep.subr.mxu0 0.0
    %919 = vmatpush1.msra.mxu0 0.0
    %920 = vmatprep.subr.mxu0 0.0
    %921 = vmatpush1.msra.mxu0 0.0
    %922 = vmatprep.subr.mxu0 0.0
    %923 = vmatpush1.msra.mxu0 0.0
    %924 = vmatprep.subr.mxu0 0.0
    %925 = vmatpush1.msra.mxu0 0.0
    %926 = vmatprep.subr.mxu0 0.0
    %927 = vmatpush1.msra.mxu0 0.0
    %928 = vmatprep.subr.mxu0 0.0
    %929 = vmatpush1.msra.mxu0 0.0
    %930 = vmatprep.subr.mxu0 0.0
    %931 = vmatpush1.msra.mxu0 0.0
    %932 = vmatprep.subr.mxu0 0.0
    %933 = vmatpush1.msra.mxu0 0.0
    %934 = vmatprep.subr.mxu0 0.0
    %935 = vmatpush1.msra.mxu0 0.0
    %936 = vmatprep.subr.mxu0 0.0
    %937 = vmatpush1.msra.mxu0 0.0
    %938 = vmatprep.subr.mxu0 0.0
    %939 = vmatpush1.msra.mxu0 0.0
    %940 = vmatprep.subr.mxu0 0.0
    %941 = vmatpush1.msra.mxu0 0.0
    %942 = vmatprep.subr.mxu0 0.0
    %943 = vmatpush1.msra.mxu0 %v914
    %944 = vmatprep.subr.mxu0 0.0
    %945 = vmatpush1.msra.mxu0 %v900
    %946 = vmatprep.subr.mxu0 0.0
    %947 = vmatpush1.msra.mxu0 %v898
    %948 = vmatprep.subr.mxu0 0.0
    %949 = vmatpush2.msra.mxu0 0.0
    %950 = vmatprep.subr.mxu0 0.0
    %951 = vmatpush2.msra.mxu0 0.0
    %952 = vmatprep.subr.mxu0 0.0
    %953 = vmatpush2.msra.mxu0 0.0
    %954 = vmatprep.subr.mxu0 0.0
    %955 = vmatpush2.msra.mxu0 0.0
    %956 = vmatprep.subr.mxu0 0.0
    %957 = vmatpush2.msra.mxu0 0.0
    %958 = vmatprep.subr.mxu0 0.0
    %959 = vmatpush2.msra.mxu0 0.0
    %960 = vmatprep.subr.mxu0 0.0
    %961 = vmatpush2.msra.mxu0 0.0
    %962 = vmatprep.subr.mxu0 0.0
    %963 = vmatpush2.msra.mxu0 0.0
    %964 = vmatprep.subr.mxu0 0.0
    %965 = vmatpush2.msra.mxu0 0.0
    %966 = vmatprep.subr.mxu0 0.0
    %967 = vmatpush2.msra.mxu0 0.0
    %968 = vmatprep.subr.mxu0 0.0
    %969 = vmatpush2.msra.mxu0 0.0
    %970 = vmatprep.subr.mxu0 0.0
    %971 = vmatpush2.msra.mxu0 0.0
    %972 = vmatprep.subr.mxu0 0.0
    %973 = vmatpush2.msra.mxu0 0.0
    %974 = vmatprep.subr.mxu0 0.0
    %975 = vmatpush2.msra.mxu0 0.0
    %976 = vmatprep.subr.mxu0 0.0
    %977 = vmatpush2.msra.mxu0 0.0
    %978 = vmatprep.subr.mxu0 0.0
    %979 = vmatpush2.msra.mxu0 0.0
    %980 = vmatprep.mubr.f32.mxu0 0.0
    %981 = vmatmul.mubr.f32.gmra.mxu0 %v906
    %v982 = vpop.f32.mrf.mxu0
    %v983 = vadd.f32 0.0, %v982
    %v984 = vpop.f32.mrf.mxu0
    %985 = vmatprep.mubr.f32.mxu0 0.0
    %986 = vmatmul.mubr.f32.gmra.mxu0 %v909
    %v987 = vpop.f32.mrf.mxu0
    %v988 = vadd.f32 0.0, %v987
    %v989 = vpop.f32.mrf.mxu0
    %990 = vmatprep.mubr.f32.mxu0 0.0
    %991 = vmatmul.mubr.f32.gmra.mxu0 %v912
    %v992 = vpop.f32.mrf.mxu0
    %v993 = vadd.f32 0.0, %v992
    %v994 = vpop.f32.mrf.mxu0
    %995 = vdwg.mxu0
    %996 = vrot.lane.b32.xlu0 %v235, 64
    %v997 = vpop.permute.xlu0 %996
    %998 = vrot.lane.b32.xlu0 %v237, 64
    %v999 = vpop.permute.xlu0 %998
    %1000 = vrot.lane.b32.xlu0 %v239, 64
    %v1001 = vpop.permute.xlu0 %1000
    %v1005 = vsel %vm663, %v791, 0
    %v1008 = vsel %vm663, %v792, 0
    %v1011 = vsel %vm663, %v793, 0
    %v1013 = vsel %vm814, %v1001, 0
    %1015 = vmatprep.subr.mxu0 0.0
    %1016 = vmatpush1.msra.mxu0 0.0
    %1017 = vmatprep.subr.mxu0 0.0
    %1018 = vmatpush1.msra.mxu0 0.0
    %1019 = vmatprep.subr.mxu0 0.0
    %1020 = vmatpush1.msra.mxu0 0.0
    %1021 = vmatprep.subr.mxu0 0.0
    %1022 = vmatpush1.msra.mxu0 0.0
    %1023 = vmatprep.subr.mxu0 0.0
    %1024 = vmatpush1.msra.mxu0 0.0
    %1025 = vmatprep.subr.mxu0 0.0
    %1026 = vmatpush1.msra.mxu0 0.0
    %1027 = vmatprep.subr.mxu0 0.0
    %1028 = vmatpush1.msra.mxu0 0.0
    %1029 = vmatprep.subr.mxu0 0.0
    %1030 = vmatpush1.msra.mxu0 0.0
    %1031 = vmatprep.subr.mxu0 0.0
    %1032 = vmatpush1.msra.mxu0 0.0
    %1033 = vmatprep.subr.mxu0 0.0
    %1034 = vmatpush1.msra.mxu0 0.0
    %1035 = vmatprep.subr.mxu0 0.0
    %1036 = vmatpush1.msra.mxu0 0.0
    %1037 = vmatprep.subr.mxu0 0.0
    %1038 = vmatpush1.msra.mxu0 0.0
    %1039 = vmatprep.subr.mxu0 0.0
    %1040 = vmatpush1.msra.mxu0 0.0
    %1041 = vmatprep.subr.mxu0 0.0
    %1042 = vmatpush1.msra.mxu0 %v1013
    %1043 = vmatprep.subr.mxu0 0.0
    %1044 = vmatpush1.msra.mxu0 %v999
    %1045 = vmatprep.subr.mxu0 0.0
    %1046 = vmatpush1.msra.mxu0 %v997
    %1047 = vmatprep.subr.mxu0 0.0
    %1048 = vmatpush2.msra.mxu0 0.0
    %1049 = vmatprep.subr.mxu0 0.0
    %1050 = vmatpush2.msra.mxu0 0.0
    %1051 = vmatprep.subr.mxu0 0.0
    %1052 = vmatpush2.msra.mxu0 0.0
    %1053 = vmatprep.subr.mxu0 0.0
    %1054 = vmatpush2.msra.mxu0 0.0
    %1055 = vmatprep.subr.mxu0 0.0
    %1056 = vmatpush2.msra.mxu0 0.0
    %1057 = vmatprep.subr.mxu0 0.0
    %1058 = vmatpush2.msra.mxu0 0.0
    %1059 = vmatprep.subr.mxu0 0.0
    %1060 = vmatpush2.msra.mxu0 0.0
    %1061 = vmatprep.subr.mxu0 0.0
    %1062 = vmatpush2.msra.mxu0 0.0
    %1063 = vmatprep.subr.mxu0 0.0
    %1064 = vmatpush2.msra.mxu0 0.0
    %1065 = vmatprep.subr.mxu0 0.0
    %1066 = vmatpush2.msra.mxu0 0.0
    %1067 = vmatprep.subr.mxu0 0.0
    %1068 = vmatpush2.msra.mxu0 0.0
    %1069 = vmatprep.subr.mxu0 0.0
    %1070 = vmatpush2.msra.mxu0 0.0
    %1071 = vmatprep.subr.mxu0 0.0
    %1072 = vmatpush2.msra.mxu0 0.0
    %1073 = vmatprep.subr.mxu0 0.0
    %1074 = vmatpush2.msra.mxu0 0.0
    %1075 = vmatprep.subr.mxu0 0.0
    %1076 = vmatpush2.msra.mxu0 0.0
    %1077 = vmatprep.subr.mxu0 0.0
    %1078 = vmatpush2.msra.mxu0 0.0
    %1079 = vmatprep.mubr.f32.mxu0 0.0
    %1080 = vmatmul.mubr.f32.gmra.mxu0 %v1005
    %v1081 = vpop.f32.mrf.mxu0
    %v1082 = vadd.f32 0.0, %v1081
    %v1083 = vpop.f32.mrf.mxu0
    %1084 = vmatprep.mubr.f32.mxu0 0.0
    %1085 = vmatmul.mubr.f32.gmra.mxu0 %v1008
    %v1086 = vpop.f32.mrf.mxu0
    %v1087 = vadd.f32 0.0, %v1086
    %v1088 = vpop.f32.mrf.mxu0
    %1089 = vmatprep.mubr.f32.mxu0 0.0
    %1090 = vmatmul.mubr.f32.gmra.mxu0 %v1011
    %v1091 = vpop.f32.mrf.mxu0
    %v1092 = vadd.f32 0.0, %v1091
    %v1093 = vpop.f32.mrf.mxu0
    %1094 = vdwg.mxu0
    %1095 = vrot.lane.b32.xlu0 %v241, 64
    %v1096 = vpop.permute.xlu0 %1095
    %1097 = vrot.lane.b32.xlu0 %v243, 64
    %v1098 = vpop.permute.xlu0 %1097
    %1099 = vrot.lane.b32.xlu0 %v245, 64
    %v1100 = vpop.permute.xlu0 %1099
    %v1104 = vsel %vm663, %v794, 0
    %v1107 = vsel %vm663, %v795, 0
    %v1110 = vsel %vm663, %v796, 0
    %v1112 = vsel %vm814, %v1100, 0
    %1114 = vmatprep.subr.mxu0 0.0
    %1115 = vmatpush1.msra.mxu0 0.0
    %1116 = vmatprep.subr.mxu0 0.0
    %1117 = vmatpush1.msra.mxu0 0.0
    %1118 = vmatprep.subr.mxu0 0.0
    %1119 = vmatpush1.msra.mxu0 0.0
    %1120 = vmatprep.subr.mxu0 0.0
    %1121 = vmatpush1.msra.mxu0 0.0
    %1122 = vmatprep.subr.mxu0 0.0
    %1123 = vmatpush1.msra.mxu0 0.0
    %1124 = vmatprep.subr.mxu0 0.0
    %1125 = vmatpush1.msra.mxu0 0.0
    %1126 = vmatprep.subr.mxu0 0.0
    %1127 = vmatpush1.msra.mxu0 0.0
    %1128 = vmatprep.subr.mxu0 0.0
    %1129 = vmatpush1.msra.mxu0 0.0
    %1130 = vmatprep.subr.mxu0 0.0
    %1131 = vmatpush1.msra.mxu0 0.0
    %1132 = vmatprep.subr.mxu0 0.0
    %1133 = vmatpush1.msra.mxu0 0.0
    %1134 = vmatprep.subr.mxu0 0.0
    %1135 = vmatpush1.msra.mxu0 0.0
    %1136 = vmatprep.subr.mxu0 0.0
    %1137 = vmatpush1.msra.mxu0 0.0
    %1138 = vmatprep.subr.mxu0 0.0
    %1139 = vmatpush1.msra.mxu0 0.0
    %1140 = vmatprep.subr.mxu0 0.0
    %1141 = vmatpush1.msra.mxu0 %v1112
    %1142 = vmatprep.subr.mxu0 0.0
    %1143 = vmatpush1.msra.mxu0 %v1098
    %1144 = vmatprep.subr.mxu0 0.0
    %1145 = vmatpush1.msra.mxu0 %v1096
    %1146 = vmatprep.subr.mxu0 0.0
    %1147 = vmatpush2.msra.mxu0 0.0
    %1148 = vmatprep.subr.mxu0 0.0
    %1149 = vmatpush2.msra.mxu0 0.0
    %1150 = vmatprep.subr.mxu0 0.0
    %1151 = vmatpush2.msra.mxu0 0.0
    %1152 = vmatprep.subr.mxu0 0.0
    %1153 = vmatpush2.msra.mxu0 0.0
    %1154 = vmatprep.subr.mxu0 0.0
    %1155 = vmatpush2.msra.mxu0 0.0
    %1156 = vmatprep.subr.mxu0 0.0
    %1157 = vmatpush2.msra.mxu0 0.0
    %1158 = vmatprep.subr.mxu0 0.0
    %1159 = vmatpush2.msra.mxu0 0.0
    %1160 = vmatprep.subr.mxu0 0.0
    %1161 = vmatpush2.msra.mxu0 0.0
    %1162 = vmatprep.subr.mxu0 0.0
    %1163 = vmatpush2.msra.mxu0 0.0
    %1164 = vmatprep.subr.mxu0 0.0
    %1165 = vmatpush2.msra.mxu0 0.0
    %1166 = vmatprep.subr.mxu0 0.0
    %1167 = vmatpush2.msra.mxu0 0.0
    %1168 = vmatprep.subr.mxu0 0.0
    %1169 = vmatpush2.msra.mxu0 0.0
    %1170 = vmatprep.subr.mxu0 0.0
    %1171 = vmatpush2.msra.mxu0 0.0
    %1172 = vmatprep.subr.mxu0 0.0
    %1173 = vmatpush2.msra.mxu0 0.0
    %1174 = vmatprep.subr.mxu0 0.0
    %1175 = vmatpush2.msra.mxu0 0.0
    %1176 = vmatprep.subr.mxu0 0.0
    %1177 = vmatpush2.msra.mxu0 0.0
    %1178 = vmatprep.mubr.f32.mxu0 0.0
    %1179 = vmatmul.mubr.f32.gmra.mxu0 %v1104
    %v1180 = vpop.f32.mrf.mxu0
    %v1181 = vadd.f32 0.0, %v1180
    %v1182 = vpop.f32.mrf.mxu0
    %1183 = vmatprep.mubr.f32.mxu0 0.0
    %1184 = vmatmul.mubr.f32.gmra.mxu0 %v1107
    %v1185 = vpop.f32.mrf.mxu0
    %v1186 = vadd.f32 0.0, %v1185
    %v1187 = vpop.f32.mrf.mxu0
    %1188 = vmatprep.mubr.f32.mxu0 0.0
    %1189 = vmatmul.mubr.f32.gmra.mxu0 %v1110
    %v1190 = vpop.f32.mrf.mxu0
    %v1191 = vadd.f32 0.0, %v1190
    %v1192 = vpop.f32.mrf.mxu0
    %1193 = vdwg.mxu0
    %1197 = vrot.lane.b32.xlu0 %v983, 8
    %v1198 = vpop.permute.xlu0 %1197
    %1199 = vrot.lane.b32.xlu0 %v988, 8
    %v1200 = vpop.permute.xlu0 %1199
    %1201 = vrot.lane.b32.xlu0 %v993, 8
    %v1202 = vpop.permute.xlu0 %1201
    %1209 = vrot.lane.b32.xlu0 %v1082, 16
    %v1210 = vpop.permute.xlu0 %1209
    %1211 = vrot.lane.b32.xlu0 %v1087, 16
    %v1212 = vpop.permute.xlu0 %1211
    %1213 = vrot.lane.b32.xlu0 %v1092, 16
    %v1214 = vpop.permute.xlu0 %1213
    %1221 = vrot.lane.b32.xlu0 %v1181, 24
    %v1222 = vpop.permute.xlu0 %1221
    %1223 = vrot.lane.b32.xlu0 %v1186, 24
    %v1224 = vpop.permute.xlu0 %1223
    %1225 = vrot.lane.b32.xlu0 %v1191, 24
    %v1226 = vpop.permute.xlu0 %1225
    %v1230 = vsel %vm252, %v884, %v1198
    %v1231 = vsel %vm252, %v889, %v1200
    %v1232 = vsel %vm252, %v894, %v1202
    %vm1233 = vcmask 130048
    %v1234 = vsel %vm1233, %v1230, %v1210
    %v1235 = vsel %vm1233, %v1231, %v1212
    %v1236 = vsel %vm1233, %v1232, %v1214
    %vm1237 = vcmask 195584
    %v1238 = vsel %vm1237, %v1234, %v1222
    %v1239 = vsel %vm1237, %v1235, %v1224
    %v1240 = vsel %vm1237, %v1236, %v1226
    %v1241 = vld [vmem:[#allocation7 + $0x20] sm:$0xff]
    %v1242 = vld [vmem:[#allocation7 + $0x28] sm:$0xff]
    %v1243 = vld [vmem:[#allocation7 + $0x30] sm:$0xff]
    %v1244 = vld [vmem:[#allocation7 + $0x38] sm:$0xff]
    %v1245 = vld [vmem:[#allocation9 + $0x1] sm:$0x1]
    %v1246 = vlaneseq
    %v1247 = vshrl.u32 %v1246, 7
    %v1248 = vsub.s32 0, %v1247
    %v1249 = vrot.slane %v1245, %v1248
    %v1251 = vsel %vm135, %v1238, 0
    %v1254 = vsel %vm135, %v1239, 0
    %v1257 = vsel %vm135, %v1240, 0
    %1259 = vmatprep.subr.mxu0 0.0
    %1260 = vmatpush1.msra.mxu0 0.0
    %1261 = vmatprep.subr.mxu0 0.0
    %1262 = vmatpush1.msra.mxu0 0.0
    %1263 = vmatprep.subr.mxu0 0.0
    %1264 = vmatpush1.msra.mxu0 0.0
    %1265 = vmatprep.subr.mxu0 0.0
    %1266 = vmatpush1.msra.mxu0 0.0
    %1267 = vmatprep.subr.mxu0 0.0
    %1268 = vmatpush1.msra.mxu0 0.0
    %1269 = vmatprep.subr.mxu0 0.0
    %1270 = vmatpush1.msra.mxu0 0.0
    %1271 = vmatprep.subr.mxu0 0.0
    %1272 = vmatpush1.msra.mxu0 0.0
    %1273 = vmatprep.subr.mxu0 0.0
    %1274 = vmatpush1.msra.mxu0 0.0
    %1275 = vmatprep.subr.mxu0 0.0
    %1276 = vmatpush1.msra.mxu0 0.0
    %1277 = vmatprep.subr.mxu0 0.0
    %1278 = vmatpush1.msra.mxu0 0.0
    %1279 = vmatprep.subr.mxu0 0.0
    %1280 = vmatpush1.msra.mxu0 0.0
    %1281 = vmatprep.subr.mxu0 0.0
    %1282 = vmatpush1.msra.mxu0 0.0
    %1283 = vmatprep.subr.mxu0 0.0
    %1284 = vmatpush1.msra.mxu0 %v1244
    %1285 = vmatprep.subr.mxu0 0.0
    %1286 = vmatpush1.msra.mxu0 %v1243
    %1287 = vmatprep.subr.mxu0 0.0
    %1288 = vmatpush1.msra.mxu0 %v1242
    %1289 = vmatprep.subr.mxu0 0.0
    %1290 = vmatpush1.msra.mxu0 %v1241
    %1291 = vmatprep.subr.mxu0 0.0
    %1292 = vmatpush2.msra.mxu0 0.0
    %1293 = vmatprep.subr.mxu0 0.0
    %1294 = vmatpush2.msra.mxu0 0.0
    %1295 = vmatprep.subr.mxu0 0.0
    %1296 = vmatpush2.msra.mxu0 0.0
    %1297 = vmatprep.subr.mxu0 0.0
    %1298 = vmatpush2.msra.mxu0 0.0
    %1299 = vmatprep.subr.mxu0 0.0
    %1300 = vmatpush2.msra.mxu0 0.0
    %1301 = vmatprep.subr.mxu0 0.0
    %1302 = vmatpush2.msra.mxu0 0.0
    %1303 = vmatprep.subr.mxu0 0.0
    %1304 = vmatpush2.msra.mxu0 0.0
    %1305 = vmatprep.subr.mxu0 0.0
    %1306 = vmatpush2.msra.mxu0 0.0
    %1307 = vmatprep.subr.mxu0 0.0
    %1308 = vmatpush2.msra.mxu0 0.0
    %1309 = vmatprep.subr.mxu0 0.0
    %1310 = vmatpush2.msra.mxu0 0.0
    %1311 = vmatprep.subr.mxu0 0.0
    %1312 = vmatpush2.msra.mxu0 0.0
    %1313 = vmatprep.subr.mxu0 0.0
    %1314 = vmatpush2.msra.mxu0 0.0
    %1315 = vmatprep.subr.mxu0 0.0
    %1316 = vmatpush2.msra.mxu0 0.0
    %1317 = vmatprep.subr.mxu0 0.0
    %1318 = vmatpush2.msra.mxu0 0.0
    %1319 = vmatprep.subr.mxu0 0.0
    %1320 = vmatpush2.msra.mxu0 0.0
    %1321 = vmatprep.subr.mxu0 0.0
    %1322 = vmatpush2.msra.mxu0 0.0
    %1323 = vmatprep.mubr.f32.mxu0 0.0
    %1324 = vmatmul.mubr.f32.gmra.mxu0 %v1251
    %v1325 = vpop.f32.mrf.mxu0
    %v1326 = vadd.f32 %v1249, %v1325
    %v1327 = vpop.f32.mrf.mxu0
    %1328 = vmatprep.mubr.f32.mxu0 0.0
    %1329 = vmatmul.mubr.f32.gmra.mxu0 %v1254
    %v1330 = vpop.f32.mrf.mxu0
    %v1331 = vadd.f32 %v1249, %v1330
    %v1332 = vpop.f32.mrf.mxu0
    %1333 = vmatprep.mubr.f32.mxu0 0.0
    %1334 = vmatmul.mubr.f32.gmra.mxu0 %v1257
    %v1335 = vpop.f32.mrf.mxu0
    %v1336 = vadd.f32 %v1249, %v1335
    %v1337 = vpop.f32.mrf.mxu0
    %1338 = vdwg.mxu0
    %v1339 = vld [vmem:[#allocation9 + $0x2] sm:$0x1]
    %v1340 = vld [vmem:[#allocation9 + $0x3] sm:$0x1]
    %v1341 = vadd.f32 %v77, %v1326
    %v1342 = vadd.f32 %v78, %v1331
    %v1343 = vadd.f32 %v76, %v1336
    %v1344 = vsel %vm135, %v1341, 0.0
    %1345 = vadd.xlane.f32.xlu0 %v1344
    %v1346 = vpop.xlane.xlu0 %1345
    %v1347 = vsel %vm135, %v1342, 0.0
    %1348 = vadd.xlane.f32.xlu0 %v1347
    %v1349 = vpop.xlane.xlu0 %1348
    %vm1350 = vcmask 254976
    %v1351 = vsel %vm1350, %v1343, 0.0
    %1352 = vadd.xlane.f32.xlu0 %v1351
    %v1353 = vpop.xlane.xlu0 %1352
    %v1354 = vrcp.pop 32.0
    %v1355 = vmul.f32 %v1346, %v1354
    %v1356 = vmul.f32 %v1349, %v1354
    %v1357 = vmul.f32 %v1353, %v1354
    %v1358 = vsub.f32 %v1341, %v1355
    %v1359 = vsub.f32 %v1342, %v1356
    %v1360 = vsub.f32 %v1343, %v1357
    %v1361 = vmul.f32 %v1358, %v1358
    %v1362 = vmul.f32 %v1359, %v1359
    %v1363 = vmul.f32 %v1360, %v1360
    %v1364 = vsel %vm135, %v1361, 0.0
    %1365 = vadd.xlane.f32.xlu0 %v1364
    %v1366 = vpop.xlane.xlu0 %1365
    %v1367 = vsel %vm135, %v1362, 0.0
    %1368 = vadd.xlane.f32.xlu0 %v1367
    %v1369 = vpop.xlane.xlu0 %1368
    %v1370 = vsel %vm1350, %v1363, 0.0
    %1371 = vadd.xlane.f32.xlu0 %v1370
    %v1372 = vpop.xlane.xlu0 %1371
    %v1373 = vmul.f32 %v1366, %v1354
    %v1374 = vmul.f32 %v1369, %v1354
    %v1375 = vmul.f32 %v1372, %v1354
    %v1376 = vadd.f32 %v1373, 1e-05
    %v1377 = vadd.f32 %v1374, 1e-05
    %v1378 = vadd.f32 %v1375, 1e-05
    %v1379 = vrsqrt.pop %v1376
    %v1380 = vrsqrt.pop %v1377
    %v1381 = vrsqrt.pop %v1378
    %v1382 = vmul.f32 %v1358, %v1379
    %v1383 = vmul.f32 %v1359, %v1380
    %v1384 = vmul.f32 %v1360, %v1381
    %v1385 = vlaneseq
    %v1386 = vshrl.u32 %v1385, 7
    %v1387 = vsub.s32 0, %v1386
    %v1388 = vrot.slane %v1339, %v1387
    %v1389 = vmul.f32 %v1382, %v1388
    %v1390 = vmul.f32 %v1383, %v1388
    %v1391 = vmul.f32 %v1384, %v1388
    %v1392 = vlaneseq
    %v1393 = vshrl.u32 %v1392, 7
    %v1394 = vsub.s32 0, %v1393
    %v1395 = vrot.slane %v1340, %v1394
    %v1396 = vadd.f32 %v1389, %v1395
    %v1397 = vadd.f32 %v1390, %v1395
    %v1398 = vadd.f32 %v1391, %v1395
    %v1399 = vld [vmem:[#allocation7 + $0x40] sm:$0xff]
    %v1400 = vld [vmem:[#allocation7 + $0x48] sm:$0xff]
    %v1401 = vld [vmem:[#allocation7 + $0x50] sm:$0xff]
    %v1402 = vld [vmem:[#allocation7 + $0x58] sm:$0xff]
    %v1403 = vld [vmem:[#allocation9 + $0x4] sm:$0x1]
    %v1404 = vld [vmem:[#allocation7 + $0x60] sm:$0xff]
    %v1405 = vld [vmem:[#allocation7 + $0x68] sm:$0xff]
    %v1406 = vld [vmem:[#allocation7 + $0x70] sm:$0xff]
    %v1407 = vld [vmem:[#allocation7 + $0x78] sm:$0xff]
    %v1408 = vld [vmem:[#allocation7 + $0x80] sm:$0xff]
    %v1409 = vld [vmem:[#allocation7 + $0x88] sm:$0xff]
    %v1410 = vld [vmem:[#allocation7 + $0x90] sm:$0xff]
    %v1411 = vld [vmem:[#allocation7 + $0x98] sm:$0xff]
    %v1412 = vld [vmem:[#allocation9 + $0x5] sm:$0x1]
    %v1413 = vlaneseq
    %v1414 = vshrl.u32 %v1413, 7
    %v1415 = vsub.s32 0, %v1414
    %v1416 = vrot.slane %v1403, %v1415
    %v1418 = vsel %vm135, %v1396, 0
    %v1421 = vsel %vm135, %v1397, 0
    %v1424 = vsel %vm135, %v1398, 0
    %1426 = vmatprep.subr.mxu0 0.0
    %1427 = vmatpush1.msra.mxu0 0.0
    %1428 = vmatprep.subr.mxu0 0.0
    %1429 = vmatpush1.msra.mxu0 0.0
    %1430 = vmatprep.subr.mxu0 0.0
    %1431 = vmatpush1.msra.mxu0 0.0
    %1432 = vmatprep.subr.mxu0 0.0
    %1433 = vmatpush1.msra.mxu0 0.0
    %1434 = vmatprep.subr.mxu0 0.0
    %1435 = vmatpush1.msra.mxu0 0.0
    %1436 = vmatprep.subr.mxu0 0.0
    %1437 = vmatpush1.msra.mxu0 0.0
    %1438 = vmatprep.subr.mxu0 0.0
    %1439 = vmatpush1.msra.mxu0 0.0
    %1440 = vmatprep.subr.mxu0 0.0
    %1441 = vmatpush1.msra.mxu0 0.0
    %1442 = vmatprep.subr.mxu0 0.0
    %1443 = vmatpush1.msra.mxu0 0.0
    %1444 = vmatprep.subr.mxu0 0.0
    %1445 = vmatpush1.msra.mxu0 0.0
    %1446 = vmatprep.subr.mxu0 0.0
    %1447 = vmatpush1.msra.mxu0 0.0
    %1448 = vmatprep.subr.mxu0 0.0
    %1449 = vmatpush1.msra.mxu0 0.0
    %1450 = vmatprep.subr.mxu0 0.0
    %1451 = vmatpush1.msra.mxu0 %v1402
    %1452 = vmatprep.subr.mxu0 0.0
    %1453 = vmatpush1.msra.mxu0 %v1401
    %1454 = vmatprep.subr.mxu0 0.0
    %1455 = vmatpush1.msra.mxu0 %v1400
    %1456 = vmatprep.subr.mxu0 0.0
    %1457 = vmatpush1.msra.mxu0 %v1399
    %1458 = vmatprep.subr.mxu0 0.0
    %1459 = vmatpush2.msra.mxu0 0.0
    %1460 = vmatprep.subr.mxu0 0.0
    %1461 = vmatpush2.msra.mxu0 0.0
    %1462 = vmatprep.subr.mxu0 0.0
    %1463 = vmatpush2.msra.mxu0 0.0
    %1464 = vmatprep.subr.mxu0 0.0
    %1465 = vmatpush2.msra.mxu0 0.0
    %1466 = vmatprep.subr.mxu0 0.0
    %1467 = vmatpush2.msra.mxu0 0.0
    %1468 = vmatprep.subr.mxu0 0.0
    %1469 = vmatpush2.msra.mxu0 0.0
    %1470 = vmatprep.subr.mxu0 0.0
    %1471 = vmatpush2.msra.mxu0 0.0
    %1472 = vmatprep.subr.mxu0 0.0
    %1473 = vmatpush2.msra.mxu0 0.0
    %1474 = vmatprep.subr.mxu0 0.0
    %1475 = vmatpush2.msra.mxu0 0.0
    %1476 = vmatprep.subr.mxu0 0.0
    %1477 = vmatpush2.msra.mxu0 0.0
    %1478 = vmatprep.subr.mxu0 0.0
    %1479 = vmatpush2.msra.mxu0 0.0
    %1480 = vmatprep.subr.mxu0 0.0
    %1481 = vmatpush2.msra.mxu0 0.0
    %1482 = vmatprep.subr.mxu0 0.0
    %1483 = vmatpush2.msra.mxu0 0.0
    %1484 = vmatprep.subr.mxu0 0.0
    %1485 = vmatpush2.msra.mxu0 0.0
    %1486 = vmatprep.subr.mxu0 0.0
    %1487 = vmatpush2.msra.mxu0 0.0
    %1488 = vmatprep.subr.mxu0 0.0
    %1489 = vmatpush2.msra.mxu0 0.0
    %1490 = vmatprep.mubr.f32.mxu0 0.0
    %1491 = vmatmul.mubr.f32.gmra.mxu0 %v1418
    %v1492 = vpop.f32.mrf.mxu0
    %v1493 = vadd.f32 %v1416, %v1492
    %v1494 = vpop.f32.mrf.mxu0
    %1495 = vmatprep.mubr.f32.mxu0 0.0
    %1496 = vmatmul.mubr.f32.gmra.mxu0 %v1421
    %v1497 = vpop.f32.mrf.mxu0
    %v1498 = vadd.f32 %v1416, %v1497
    %v1499 = vpop.f32.mrf.mxu0
    %1500 = vmatprep.mubr.f32.mxu0 0.0
    %1501 = vmatmul.mubr.f32.gmra.mxu0 %v1424
    %v1502 = vpop.f32.mrf.mxu0
    %v1503 = vadd.f32 %v1416, %v1502
    %v1504 = vpop.f32.mrf.mxu0
    %1505 = vdwg.mxu0
    %v1506 = vmax.f32 %v1493, 0.0
    %v1507 = vmax.f32 %v1498, 0.0
    %v1508 = vmax.f32 %v1503, 0.0
    %v1509 = vlaneseq
    %v1510 = vshrl.u32 %v1509, 7
    %v1511 = vsub.s32 0, %v1510
    %v1512 = vrot.slane %v1412, %v1511
    %vm1513 = vcmask 523264
    %v1515 = vsel %vm1513, %v1506, 0
    %v1518 = vsel %vm1513, %v1507, 0
    %v1521 = vsel %vm1513, %v1508, 0
    %1523 = vmatprep.subr.mxu0 0.0
    %1524 = vmatpush1.msra.mxu0 0.0
    %1525 = vmatprep.subr.mxu0 0.0
    %1526 = vmatpush1.msra.mxu0 0.0
    %1527 = vmatprep.subr.mxu0 0.0
    %1528 = vmatpush1.msra.mxu0 0.0
    %1529 = vmatprep.subr.mxu0 0.0
    %1530 = vmatpush1.msra.mxu0 0.0
    %1531 = vmatprep.subr.mxu0 0.0
    %1532 = vmatpush1.msra.mxu0 0.0
    %1533 = vmatprep.subr.mxu0 0.0
    %1534 = vmatpush1.msra.mxu0 0.0
    %1535 = vmatprep.subr.mxu0 0.0
    %1536 = vmatpush1.msra.mxu0 0.0
    %1537 = vmatprep.subr.mxu0 0.0
    %1538 = vmatpush1.msra.mxu0 0.0
    %1539 = vmatprep.subr.mxu0 0.0
    %1540 = vmatpush1.msra.mxu0 %v1411
    %1541 = vmatprep.subr.mxu0 0.0
    %1542 = vmatpush1.msra.mxu0 %v1410
    %1543 = vmatprep.subr.mxu0 0.0
    %1544 = vmatpush1.msra.mxu0 %v1409
    %1545 = vmatprep.subr.mxu0 0.0
    %1546 = vmatpush1.msra.mxu0 %v1408
    %1547 = vmatprep.subr.mxu0 0.0
    %1548 = vmatpush1.msra.mxu0 %v1407
    %1549 = vmatprep.subr.mxu0 0.0
    %1550 = vmatpush1.msra.mxu0 %v1406
    %1551 = vmatprep.subr.mxu0 0.0
    %1552 = vmatpush1.msra.mxu0 %v1405
    %1553 = vmatprep.subr.mxu0 0.0
    %1554 = vmatpush1.msra.mxu0 %v1404
    %1555 = vmatprep.subr.mxu0 0.0
    %1556 = vmatpush2.msra.mxu0 0.0
    %1557 = vmatprep.subr.mxu0 0.0
    %1558 = vmatpush2.msra.mxu0 0.0
    %1559 = vmatprep.subr.mxu0 0.0
    %1560 = vmatpush2.msra.mxu0 0.0
    %1561 = vmatprep.subr.mxu0 0.0
    %1562 = vmatpush2.msra.mxu0 0.0
    %1563 = vmatprep.subr.mxu0 0.0
    %1564 = vmatpush2.msra.mxu0 0.0
    %1565 = vmatprep.subr.mxu0 0.0
    %1566 = vmatpush2.msra.mxu0 0.0
    %1567 = vmatprep.subr.mxu0 0.0
    %1568 = vmatpush2.msra.mxu0 0.0
    %1569 = vmatprep.subr.mxu0 0.0
    %1570 = vmatpush2.msra.mxu0 0.0
    %1571 = vmatprep.subr.mxu0 0.0
    %1572 = vmatpush2.msra.mxu0 0.0
    %1573 = vmatprep.subr.mxu0 0.0
    %1574 = vmatpush2.msra.mxu0 0.0
    %1575 = vmatprep.subr.mxu0 0.0
    %1576 = vmatpush2.msra.mxu0 0.0
    %1577 = vmatprep.subr.mxu0 0.0
    %1578 = vmatpush2.msra.mxu0 0.0
    %1579 = vmatprep.subr.mxu0 0.0
    %1580 = vmatpush2.msra.mxu0 0.0
    %1581 = vmatprep.subr.mxu0 0.0
    %1582 = vmatpush2.msra.mxu0 0.0
    %1583 = vmatprep.subr.mxu0 0.0
    %1584 = vmatpush2.msra.mxu0 0.0
    %1585 = vmatprep.subr.mxu0 0.0
    %1586 = vmatpush2.msra.mxu0 0.0
    %1587 = vmatprep.mubr.f32.mxu0 0.0
    %1588 = vmatmul.mubr.f32.gmra.mxu0 %v1515
    %v1589 = vpop.f32.mrf.mxu0
    %v1590 = vpop.f32.mrf.mxu0
    %1591 = vmatprep.mubr.f32.mxu0 0.0
    %1592 = vmatmul.mubr.f32.gmra.mxu0 %v1518
    %v1593 = vpop.f32.mrf.mxu0
    %v1594 = vpop.f32.mrf.mxu0
    %1595 = vmatprep.mubr.f32.mxu0 0.0
    %1596 = vmatmul.mubr.f32.gmra.mxu0 %v1521
    %v1597 = vpop.f32.mrf.mxu0
    %v1598 = vadd.f32 %v1512, %v1597
    %v1599 = vpop.f32.mrf.mxu0
    %1600 = vdwg.mxu0
    %v1601 = vld [vmem:[#allocation9 + $0x6] sm:$0x1]
    %v1602 = vld [vmem:[#allocation9 + $0x7] sm:$0x1]
    %v1603 = vadd.f32 %v1398, %v1598
    %v1604 = vsel %vm1350, %v1603, 0.0
    %1605 = vadd.xlane.f32.xlu0 %v1604
    %v1606 = vpop.xlane.xlu0 %1605
    %v1607 = vmul.f32 %v1606, %v1354
    %v1608 = vsub.f32 %v1603, %v1607
    %v1609 = vmul.f32 %v1608, %v1608
    %v1610 = vsel %vm1350, %v1609, 0.0
    %1611 = vadd.xlane.f32.xlu0 %v1610
    %v1612 = vpop.xlane.xlu0 %1611
    %v1613 = vmul.f32 %v1612, %v1354
    %v1614 = vadd.f32 %v1613, 1e-05
    %v1615 = vrsqrt.pop %v1614
    %v1616 = vmul.f32 %v1608, %v1615
    %v1617 = vlaneseq
    %v1618 = vshrl.u32 %v1617, 7
    %v1619 = vsub.s32 0, %v1618
    %v1620 = vrot.slane %v1601, %v1619
    %v1621 = vmul.f32 %v1616, %v1620
    %v1622 = vlaneseq
    %v1623 = vshrl.u32 %v1622, 7
    %v1624 = vsub.s32 0, %v1623
    %v1625 = vrot.slane %v1602, %v1624
    %v1626 = vadd.f32 %v1621, %v1625
    %v1627 = vld [vmem:[#allocation7 + $0xa0] sm:$0xff]
    %v1628 = vld [vmem:[#allocation7 + $0xa8] sm:$0xff]
    %v1629 = vld [vmem:[#allocation7 + $0xb0] sm:$0xff]
    %v1630 = vld [vmem:[#allocation7 + $0xb8] sm:$0xff]
    %v1631 = vld [vmem:[#allocation9 + $0x8] sm:$0x1]
    %v1632 = vlaneseq
    %v1633 = vshrl.u32 %v1632, 7
    %v1634 = vsub.s32 0, %v1633
    %v1635 = vrot.slane %v1631, %v1634
    %v1637 = vsel %vm135, %v1626, 0
    %1639 = vmatprep.subr.mxu0 0.0
    %1640 = vmatpush1.msra.mxu0 0.0
    %1641 = vmatprep.subr.mxu0 0.0
    %1642 = vmatpush1.msra.mxu0 0.0
    %1643 = vmatprep.subr.mxu0 0.0
    %1644 = vmatpush1.msra.mxu0 0.0
    %1645 = vmatprep.subr.mxu0 0.0
    %1646 = vmatpush1.msra.mxu0 0.0
    %1647 = vmatprep.subr.mxu0 0.0
    %1648 = vmatpush1.msra.mxu0 0.0
    %1649 = vmatprep.subr.mxu0 0.0
    %1650 = vmatpush1.msra.mxu0 0.0
    %1651 = vmatprep.subr.mxu0 0.0
    %1652 = vmatpush1.msra.mxu0 0.0
    %1653 = vmatprep.subr.mxu0 0.0
    %1654 = vmatpush1.msra.mxu0 0.0
    %1655 = vmatprep.subr.mxu0 0.0
    %1656 = vmatpush1.msra.mxu0 0.0
    %1657 = vmatprep.subr.mxu0 0.0
    %1658 = vmatpush1.msra.mxu0 0.0
    %1659 = vmatprep.subr.mxu0 0.0
    %1660 = vmatpush1.msra.mxu0 0.0
    %1661 = vmatprep.subr.mxu0 0.0
    %1662 = vmatpush1.msra.mxu0 0.0
    %1663 = vmatprep.subr.mxu0 0.0
    %1664 = vmatpush1.msra.mxu0 %v1630
    %1665 = vmatprep.subr.mxu0 0.0
    %1666 = vmatpush1.msra.mxu0 %v1629
    %1667 = vmatprep.subr.mxu0 0.0
    %1668 = vmatpush1.msra.mxu0 %v1628
    %1669 = vmatprep.subr.mxu0 0.0
    %1670 = vmatpush1.msra.mxu0 %v1627
    %1671 = vmatprep.subr.mxu0 0.0
    %1672 = vmatpush2.msra.mxu0 0.0
    %1673 = vmatprep.subr.mxu0 0.0
    %1674 = vmatpush2.msra.mxu0 0.0
    %1675 = vmatprep.subr.mxu0 0.0
    %1676 = vmatpush2.msra.mxu0 0.0
    %1677 = vmatprep.subr.mxu0 0.0
    %1678 = vmatpush2.msra.mxu0 0.0
    %1679 = vmatprep.subr.mxu0 0.0
    %1680 = vmatpush2.msra.mxu0 0.0
    %1681 = vmatprep.subr.mxu0 0.0
    %1682 = vmatpush2.msra.mxu0 0.0
    %1683 = vmatprep.subr.mxu0 0.0
    %1684 = vmatpush2.msra.mxu0 0.0
    %1685 = vmatprep.subr.mxu0 0.0
    %1686 = vmatpush2.msra.mxu0 0.0
    %1687 = vmatprep.subr.mxu0 0.0
    %1688 = vmatpush2.msra.mxu0 0.0
    %1689 = vmatprep.subr.mxu0 0.0
    %1690 = vmatpush2.msra.mxu0 0.0
    %1691 = vmatprep.subr.mxu0 0.0
    %1692 = vmatpush2.msra.mxu0 0.0
    %1693 = vmatprep.subr.mxu0 0.0
    %1694 = vmatpush2.msra.mxu0 0.0
    %1695 = vmatprep.subr.mxu0 0.0
    %1696 = vmatpush2.msra.mxu0 0.0
    %1697 = vmatprep.subr.mxu0 0.0
    %1698 = vmatpush2.msra.mxu0 0.0
    %1699 = vmatprep.subr.mxu0 0.0
    %1700 = vmatpush2.msra.mxu0 0.0
    %1701 = vmatprep.subr.mxu0 0.0
    %1702 = vmatpush2.msra.mxu0 0.0
    %1703 = vmatprep.mubr.f32.mxu0 0.0
    %1704 = vmatmul.mubr.f32.gmra.mxu0 %v1637
    %v1705 = vpop.f32.mrf.mxu0
    %v1706 = vadd.f32 %v1635, %v1705
    %v1707 = vpop.f32.mrf.mxu0
    %1708 = vdwg.mxu0
    %vm1709 = vcmask 123904
    %1710 = vst.msk [vmem:[#allocation10] sm:$0x3] %vm1709, %v1706
    // Predicated region
    $region34: #{proj_net_forward.1} parent=1 // pred_check
      _
    $region35: #{proj_net_forward.1} parent=1 // pred_check_branch
      %1712 = sbr.rel (0) target = $region37
    $region36: #{proj_net_forward.1} parent=1 // pred_region
      %s1714 = ssub.s32 32, 32
      %1715 = vsyncadd [#allocation4], %s1714
      %s1717 = sshll.u32 [#allocation10], 4
      %s1718 = int_to_ptr.vmem [resolvable:$true] %s1717
      %1720 = dma.vmem_to_hbm [thread:$0]  %s1718, 32, %s4, [#allocation4]
    $region37: #{proj_net_forward.1} parent=1 // pred_fallthru
      _
    // Predicated region
    $region38: #{proj_net_forward.1} parent=1 // pred_check
      _
    $region39: #{proj_net_forward.1} parent=1 // pred_check_branch
      %1722 = sbr.rel (0) target = $region41
    $region40: #{proj_net_forward.1} parent=1 // pred_region
      %1723 = dma.done [#allocation4], 32
    $region41: #{proj_net_forward.1} parent=1 // pred_fallthru
      _
    %1724 = vsyncpa [#allocation3], 1
    %1725 = vsyncpa [#allocation8], 1
    %1726 = vsyncpa [#allocation4], 1
    %1727 = vsyncpa [#allocation5], 1

</llo_original>
